<compile_context>
chip_gen: v5e
topology: v5e:2x2
jax: 0.10.0
libtpu: 0.0.40
codegen_flags: <defaults>
</compile_context>

<pallas_src>
import functools

import jax
import jax.numpy as jnp
from jax.experimental import pallas as pl
from jax.experimental.pallas import tpu as pltpu

# ---- model config (small, deterministic) -----------------------------------
B = 2            # batch
S = 8            # sequence length
H = 32           # hidden width
N_HEADS = 4
HEAD_DIM = H // N_HEADS
FFN = 64         # intermediate width
N_LAYERS = 2     # n_layers_per_group
SCALE = 1.0 / (HEAD_DIM ** 0.5)
LN_EPS = 1e-5
NS = N_HEADS * S  # lane width of the block-diagonal attention slabs (= 32)

# (m, d) x (n, d) -> (m, n) contraction: no explicit transpose of the rhs.
_NT_DIMS = (((1,), (1,)), ((), ()))


def _layernorm(h, w, b):
    mu = jnp.mean(h, axis=-1, keepdims=True)
    var = jnp.mean((h - mu) ** 2, axis=-1, keepdims=True)
    return (h - mu) * jax.lax.rsqrt(var + LN_EPS) * w + b


def _gelu(h):
    # "gelu_new" tanh approximation (ALBERT's feed-forward activation)
    return 0.5 * h * (1.0 + jnp.tanh(0.7978845608028654 * (h + 0.044715 * h * h * h)))


# ---- Pallas kernel: one batch element per grid step, all layers fused -------
def albert_group_kernel(x_ref, bias_ref, hmask_ref,
                        wqkv_ref, bqkv_ref, wo_ref, bo_ref,
                        ln1w_ref, ln1b_ref, ln2w_ref, ln2b_ref,
                        w1_ref, b1_ref, w2_ref, b2_ref,
                        out_ref):
    x = x_ref[0]                    # (S, H) f32 residual stream (this batch element)
    attn_bias = bias_ref[0]         # (S, NS) f32 additive key-padding bias (0 / -1e30)
    head_mask = hmask_ref[...]      # (NS, H) f32 0/1 block-diagonal head mask

    for l in range(N_LAYERS):
        # --- fused QKV projection (softmax scale pre-folded into the Q block) ---
        qkv = jnp.dot(x.astype(jnp.bfloat16), wqkv_ref[l],
                      preferred_element_type=jnp.float32) + bqkv_ref[l]   # (S, 3H)
        q = qkv[:, 0:H]
        k = qkv[:, H:2 * H]
        v = qkv[:, 2 * H:3 * H]

        # --- block-diagonal K / V slabs: heads stay in the lane dim, no transposes
        k_bd = (jnp.tile(k, (N_HEADS, 1)) * head_mask).astype(jnp.bfloat16)  # (NS, H)
        v_bd = (jnp.tile(v, (N_HEADS, 1)) * head_mask).astype(jnp.bfloat16)  # (NS, H)

        # scores[i, h*S + j] = q_h[i] . k_h[j]   -- one MXU op covers all heads
        scores = jax.lax.dot_general(q.astype(jnp.bfloat16), k_bd, _NT_DIMS,
                                     preferred_element_type=jnp.float32)
        scores = scores + attn_bias                                       # (S, NS)

        # --- per-head softmax over the S-lane key segments ---
        s3 = scores.reshape(S, N_HEADS, S)
        m = jnp.max(s3, axis=-1, keepdims=True)
        p3 = jnp.exp(s3 - m)
        p3 = p3 * pl.reciprocal(jnp.sum(p3, axis=-1, keepdims=True), approx=True)
        p = p3.reshape(S, NS)

        # ctx[i, c] = sum_j p_{head(c)}[i, j] * v[j, c] -- heads re-merge for free
        ctx = jnp.dot(p.astype(jnp.bfloat16), v_bd,
                      preferred_element_type=jnp.float32)                 # (S, H)

        attn = jnp.dot(ctx.astype(jnp.bfloat16), wo_ref[l],
                       preferred_element_type=jnp.float32) + bo_ref[l]
        x = _layernorm(x + attn, ln1w_ref[l], ln1b_ref[l])    # post-LN residual

        # --- pointwise feed-forward ---
        ff = jnp.dot(x.astype(jnp.bfloat16), w1_ref[l],
                     preferred_element_type=jnp.float32) + b1_ref[l]
        ff = _gelu(ff)
        ff = jnp.dot(ff.astype(jnp.bfloat16), w2_ref[l],
                     preferred_element_type=jnp.float32) + b2_ref[l]
        x = _layernorm(x + ff, ln2w_ref[l], ln2b_ref[l])      # post-LN residual

    # TODO(synk): lane-dense (multiple-of-128) output slab skipped: the whole
    # output is 2 KiB at this size, so masked vst stores are pure noise.
    out_ref[0] = x


def _resident(arr):
    """Full-array spec revisited at every grid step (stays VMEM-resident)."""
    return pl.BlockSpec(arr.shape, lambda b, nd=arr.ndim: (0,) * nd)


def albert_layer_group(hidden, attention_mask, params):
    """hidden: (B, S, H) float32; attention_mask: (B, S) bool (True = attend)."""
    x = hidden.astype(jnp.float32)

    # Fold the softmax scale into the query projection; fuse Q/K/V; bf16 MXU weights.
    # (Constant-folded at compile time when params are bound via partial + jit.)
    wqkv = jnp.concatenate([params["wq"] * SCALE, params["wk"], params["wv"]],
                           axis=-1).astype(jnp.bfloat16)                    # (L, H, 3H)
    bqkv = jnp.concatenate([params["bq"] * SCALE, params["bk"], params["bv"]],
                           axis=-1).astype(jnp.float32)                     # (L, 3H)
    wo = params["wo"].astype(jnp.bfloat16)
    w1 = params["w1"].astype(jnp.bfloat16)
    w2 = params["w2"].astype(jnp.bfloat16)

    # 0/1 block-diagonal head mask: row h*S+j keeps only head h's channel block.
    row_head = (jnp.arange(NS, dtype=jnp.int32) // S)[:, None]
    col_head = (jnp.arange(H, dtype=jnp.int32) // HEAD_DIM)[None, :]
    head_mask = (row_head == col_head).astype(jnp.float32)                  # (NS, H)

    # Additive key-padding bias, pre-broadcast to the score layout (B, S, NS).
    key_bias = jnp.where(attention_mask, 0.0, -1e30).astype(jnp.float32)    # (B, S)
    bias = jnp.broadcast_to(jnp.tile(key_bias, (1, N_HEADS))[:, None, :],
                            (B, S, NS))                                     # (B, S, NS)

    out = pl.pallas_call(
        albert_group_kernel,
        out_shape=jax.ShapeDtypeStruct((B, S, H), jnp.float32),
        grid=(B,),
        in_specs=[
            pl.BlockSpec((1, S, H), lambda b: (b, 0, 0)),     # x (per-batch block)
            pl.BlockSpec((1, S, NS), lambda b: (b, 0, 0)),    # additive attention bias
            _resident(head_mask),
            _resident(wqkv), _resident(bqkv),
            _resident(wo), _resident(params["bo"]),
            _resident(params["ln1w"]), _resident(params["ln1b"]),
            _resident(params["ln2w"]), _resident(params["ln2b"]),
            _resident(w1), _resident(params["b1"]),
            _resident(w2), _resident(params["b2"]),
        ],
        out_specs=pl.BlockSpec((1, S, H), lambda b: (b, 0, 0)),
        compiler_params=pltpu.CompilerParams(dimension_semantics=("parallel",)),
    )(x, bias, head_mask,
      wqkv, bqkv, wo, params["bo"],
      params["ln1w"], params["ln1b"], params["ln2w"], params["ln2b"],
      w1, params["b1"], w2, params["b2"])
    return out


# ---- pure-JAX f32 reference (torch-module math) for a correctness check -----
def albert_reference(hidden, attention_mask, params):
    x = hidden.astype(jnp.float32)
    mask = attention_mask[:, None, None, :]                      # (B,1,1,S)
    split = lambda t: t.reshape(B, S, N_HEADS, HEAD_DIM).transpose(0, 2, 1, 3)
    for l in range(N_LAYERS):
        q = split(x @ params["wq"][l] + params["bq"][l])
        k = split(x @ params["wk"][l] + params["bk"][l])
        v = split(x @ params["wv"][l] + params["bv"][l])
        scores = jnp.einsum('bhqd,bhkd->bhqk', q, k) * SCALE
        scores = jnp.where(mask, scores, -1e30)
        p = jax.nn.softmax(scores, axis=-1)
        ctx = jnp.einsum('bhqk,bhkd->bhqd', p, v)
        ctx = ctx.transpose(0, 2, 1, 3).reshape(B, S, H)
        attn = ctx @ params["wo"][l] + params["bo"][l]
        x = _layernorm(x + attn, params["ln1w"][l], params["ln1b"][l])
        ff = _gelu(x @ params["w1"][l] + params["b1"][l])
        ff = ff @ params["w2"][l] + params["b2"][l]
        x = _layernorm(x + ff, params["ln2w"][l], params["ln2b"][l])
    return x


def init_params(key):
    ks = jax.random.split(key, 12)

    def w(k, shape, scale):
        # Round matmul weights through bf16 so the kernel's bf16 MXU operands
        # and the f32 reference see identical values.
        v = (scale * jax.random.normal(k, shape)).astype(jnp.float32)
        return v.astype(jnp.bfloat16).astype(jnp.float32)

    def b(k, shape, scale):
        return (scale * jax.random.normal(k, shape)).astype(jnp.float32)

    return {
        "wq": w(ks[0], (N_LAYERS, H, H), 0.08),
        "wk": w(ks[1], (N_LAYERS, H, H), 0.08),
        "wv": w(ks[2], (N_LAYERS, H, H), 0.08),
        "bq": b(ks[3], (N_LAYERS, H), 0.01),
        "bk": b(ks[4], (N_LAYERS, H), 0.01),
        "bv": b(ks[5], (N_LAYERS, H), 0.01),
        "wo": w(ks[6], (N_LAYERS, H, H), 0.08),
        "bo": b(ks[7], (N_LAYERS, H), 0.01),
        "ln1w": jnp.ones((N_LAYERS, H), jnp.float32),
        "ln1b": jnp.zeros((N_LAYERS, H), jnp.float32),
        "ln2w": jnp.ones((N_LAYERS, H), jnp.float32),
        "ln2b": jnp.zeros((N_LAYERS, H), jnp.float32),
        "w1": w(ks[8], (N_LAYERS, H, FFN), 0.08),
        "b1": b(ks[9], (N_LAYERS, FFN), 0.01),
        "w2": w(ks[10], (N_LAYERS, FFN, H), 0.08),
        "b2": b(ks[11], (N_LAYERS, H), 0.01),
    }


if __name__ == "__main__":
    key = jax.random.PRNGKey(0)
    k_x, k_p = jax.random.split(key)
    params = init_params(k_p)

    hidden = (0.5 * jax.random.normal(k_x, (B, S, H))).astype(jnp.float32)
    # AttentionMask: batch 0 fully valid, batch 1 has 2 padding tokens at the end.
    attention_mask = jnp.array(
        [[True] * S, [True] * (S - 2) + [False] * 2], dtype=jnp.bool_)

    fn = jax.jit(functools.partial(albert_layer_group, params=params))
    out = jax.block_until_ready(fn(hidden, attention_mask))

    ref = albert_reference(hidden, attention_mask, params)
    assert out.shape == (B, S, H)
    err = float(jnp.max(jnp.abs(out - ref)))
    # Tolerance covers bf16 MXU operands + approx reciprocal vs the f32 reference.
    assert err < 2e-2, f"kernel mismatch vs reference: {err}"
    print("KERNEL_OK")
</pallas_src>

<mosaic_0001>
module attributes {stable_mosaic.version = 11 : i64} {
  func.func @albert_group_kernel(%arg0: i32, %arg1: memref<1x8x32xf32, #tpu.memory_space<vmem>>, %arg2: memref<1x8x32xf32, #tpu.memory_space<vmem>>, %arg3: memref<32x32xf32, #tpu.memory_space<vmem>>, %arg4: memref<2x32x96xbf16, #tpu.memory_space<vmem>>, %arg5: memref<2x96xf32, #tpu.memory_space<vmem>>, %arg6: memref<2x32x32xbf16, #tpu.memory_space<vmem>>, %arg7: memref<2x32xf32, #tpu.memory_space<vmem>>, %arg8: memref<2x32xf32, #tpu.memory_space<vmem>>, %arg9: memref<2x32xf32, #tpu.memory_space<vmem>>, %arg10: memref<2x32xf32, #tpu.memory_space<vmem>>, %arg11: memref<2x32xf32, #tpu.memory_space<vmem>>, %arg12: memref<2x32x64xbf16, #tpu.memory_space<vmem>>, %arg13: memref<2x64xf32, #tpu.memory_space<vmem>>, %arg14: memref<2x64x32xbf16, #tpu.memory_space<vmem>>, %arg15: memref<2x32xf32, #tpu.memory_space<vmem>>, %arg16: memref<1x8x32xf32, #tpu.memory_space<vmem>>) attributes {dimension_semantics = [#tpu.dimension_semantics<parallel>], iteration_bounds = array<i64: 2>, scalar_prefetch = 0 : i64, scratch_operands = 0 : i64, tpu.core_type = #tpu.core_type<tc>, window_params = [{transform_indices = @transform_0, window_bounds = array<i64: 1, 8, 32>}, {transform_indices = @transform_1, window_bounds = array<i64: 1, 8, 32>}, {pipeline_mode = #tpu.pipeline_mode<synchronous>, transform_indices = @transform_2, window_bounds = array<i64: 32, 32>}, {pipeline_mode = #tpu.pipeline_mode<synchronous>, transform_indices = @transform_3, window_bounds = array<i64: 2, 32, 96>}, {pipeline_mode = #tpu.pipeline_mode<synchronous>, transform_indices = @transform_4, window_bounds = array<i64: 2, 96>}, {pipeline_mode = #tpu.pipeline_mode<synchronous>, transform_indices = @transform_5, window_bounds = array<i64: 2, 32, 32>}, {pipeline_mode = #tpu.pipeline_mode<synchronous>, transform_indices = @transform_6, window_bounds = array<i64: 2, 32>}, {pipeline_mode = #tpu.pipeline_mode<synchronous>, transform_indices = @transform_7, window_bounds = array<i64: 2, 32>}, {pipeline_mode = #tpu.pipeline_mode<synchronous>, transform_indices = @transform_8, window_bounds = array<i64: 2, 32>}, {pipeline_mode = #tpu.pipeline_mode<synchronous>, transform_indices = @transform_9, window_bounds = array<i64: 2, 32>}, {pipeline_mode = #tpu.pipeline_mode<synchronous>, transform_indices = @transform_10, window_bounds = array<i64: 2, 32>}, {pipeline_mode = #tpu.pipeline_mode<synchronous>, transform_indices = @transform_11, window_bounds = array<i64: 2, 32, 64>}, {pipeline_mode = #tpu.pipeline_mode<synchronous>, transform_indices = @transform_12, window_bounds = array<i64: 2, 64>}, {pipeline_mode = #tpu.pipeline_mode<synchronous>, transform_indices = @transform_13, window_bounds = array<i64: 2, 64, 32>}, {pipeline_mode = #tpu.pipeline_mode<synchronous>, transform_indices = @transform_14, window_bounds = array<i64: 2, 32>}, {transform_indices = @transform_15, window_bounds = array<i64: 1, 8, 32>}]} {
    %c0 = arith.constant 0 : index
    %c0_0 = arith.constant 0 : index
    %c0_1 = arith.constant 0 : index
    %0 = vector.load %arg1[%c0, %c0_0, %c0_1] : memref<1x8x32xf32, #tpu.memory_space<vmem>>, vector<1x8x32xf32>
    %1 = vector.shape_cast %0 : vector<1x8x32xf32> to vector<8x32xf32>
    %c0_2 = arith.constant 0 : index
    %c0_3 = arith.constant 0 : index
    %c0_4 = arith.constant 0 : index
    %2 = vector.load %arg2[%c0_2, %c0_3, %c0_4] : memref<1x8x32xf32, #tpu.memory_space<vmem>>, vector<1x8x32xf32>
    %3 = vector.shape_cast %2 : vector<1x8x32xf32> to vector<8x32xf32>
    %c0_5 = arith.constant 0 : index
    %c0_6 = arith.constant 0 : index
    %4 = vector.load %arg3[%c0_5, %c0_6] : memref<32x32xf32, #tpu.memory_space<vmem>>, vector<32x32xf32>
    %5 = arith.truncf %1 : vector<8x32xf32> to vector<8x32xbf16>
    %c0_7 = arith.constant 0 : index
    %c0_8 = arith.constant 0 : index
    %c0_9 = arith.constant 0 : index
    %6 = vector.load %arg4[%c0_7, %c0_8, %c0_9] : memref<2x32x96xbf16, #tpu.memory_space<vmem>>, vector<1x32x96xbf16>
    %7 = vector.shape_cast %6 : vector<1x32x96xbf16> to vector<32x96xbf16>
    %cst = arith.constant dense<0.000000e+00> : vector<8x96xf32>
    %8 = tpu.matmul %5, %7, %cst {dimension_numbers = #tpu.dot_dimension_numbers<[1], [0], [0], [1], [0, 0, 1, 1], [], []>} : vector<8x32xbf16>, vector<32x96xbf16>, vector<8x96xf32> -> vector<8x96xf32>
    %c0_10 = arith.constant 0 : index
    %c0_11 = arith.constant 0 : index
    %9 = vector.load %arg5[%c0_10, %c0_11] : memref<2x96xf32, #tpu.memory_space<vmem>>, vector<1x96xf32>
    %10 = vector.shape_cast %9 : vector<1x96xf32> to vector<96xf32>
    %11 = vector.shape_cast %10 : vector<96xf32> to vector<1x96xf32>
    %12 = vector.broadcast %11 : vector<1x96xf32> to vector<8x96xf32>
    %13 = arith.addf %8, %12 : vector<8x96xf32>
    %14 = vector.extract_strided_slice %13 {offsets = [0, 0], sizes = [8, 32], strides = [1, 1]} : vector<8x96xf32> to vector<8x32xf32>
    %15 = vector.extract_strided_slice %13 {offsets = [0, 32], sizes = [8, 32], strides = [1, 1]} : vector<8x96xf32> to vector<8x32xf32>
    %16 = vector.extract_strided_slice %13 {offsets = [0, 64], sizes = [8, 32], strides = [1, 1]} : vector<8x96xf32> to vector<8x32xf32>
    %17 = tpu.concatenate %15, %15, %15, %15 in 0 : vector<8x32xf32>, vector<8x32xf32>, vector<8x32xf32>, vector<8x32xf32> -> vector<32x32xf32>
    %18 = arith.mulf %17, %4 : vector<32x32xf32>
    %19 = arith.truncf %18 : vector<32x32xf32> to vector<32x32xbf16>
    %20 = tpu.concatenate %16, %16, %16, %16 in 0 : vector<8x32xf32>, vector<8x32xf32>, vector<8x32xf32>, vector<8x32xf32> -> vector<32x32xf32>
    %21 = arith.mulf %20, %4 : vector<32x32xf32>
    %22 = arith.truncf %21 : vector<32x32xf32> to vector<32x32xbf16>
    %23 = arith.truncf %14 : vector<8x32xf32> to vector<8x32xbf16>
    %cst_12 = arith.constant dense<0.000000e+00> : vector<8x32xf32>
    %24 = tpu.matmul %23, %19, %cst_12 {dimension_numbers = #tpu.dot_dimension_numbers<[1], [1], [0], [0], [0, 0, 1, 0], [], []>} : vector<8x32xbf16>, vector<32x32xbf16>, vector<8x32xf32> -> vector<8x32xf32>
    %25 = arith.addf %24, %3 : vector<8x32xf32>
    %26 = vector.shape_cast %25 : vector<8x32xf32> to vector<8x4x8xf32>
    %cst_13 = arith.constant dense<0xFF800000> : vector<8x4xf32>
    %27 = vector.multi_reduction <maximumf>, %26, %cst_13 [2] : vector<8x4x8xf32> to vector<8x4xf32>
    %28 = vector.shape_cast %27 : vector<8x4xf32> to vector<8x4x1xf32>
    %29 = vector.broadcast %28 : vector<8x4x1xf32> to vector<8x4x8xf32>
    %30 = arith.subf %26, %29 : vector<8x4x8xf32>
    %31 = math.exp %30 : vector<8x4x8xf32>
    %cst_14 = arith.constant dense<0.000000e+00> : vector<8x4xf32>
    %32 = vector.multi_reduction <add>, %31, %cst_14 [2] : vector<8x4x8xf32> to vector<8x4xf32>
    %33 = vector.shape_cast %32 : vector<8x4xf32> to vector<8x4x1xf32>
    %34 = tpu.reciprocal %33 {approx = true} : vector<8x4x1xf32> -> vector<8x4x1xf32>
    %35 = vector.broadcast %34 : vector<8x4x1xf32> to vector<8x4x8xf32>
    %36 = arith.mulf %31, %35 : vector<8x4x8xf32>
    %37 = vector.shape_cast %36 : vector<8x4x8xf32> to vector<8x32xf32>
    %38 = arith.truncf %37 : vector<8x32xf32> to vector<8x32xbf16>
    %cst_15 = arith.constant dense<0.000000e+00> : vector<8x32xf32>
    %39 = tpu.matmul %38, %22, %cst_15 {dimension_numbers = #tpu.dot_dimension_numbers<[1], [0], [0], [1], [0, 0, 1, 1], [], []>} : vector<8x32xbf16>, vector<32x32xbf16>, vector<8x32xf32> -> vector<8x32xf32>
    %40 = arith.truncf %39 : vector<8x32xf32> to vector<8x32xbf16>
    %c0_16 = arith.constant 0 : index
    %c0_17 = arith.constant 0 : index
    %c0_18 = arith.constant 0 : index
    %41 = vector.load %arg6[%c0_16, %c0_17, %c0_18] : memref<2x32x32xbf16, #tpu.memory_space<vmem>>, vector<1x32x32xbf16>
    %42 = vector.shape_cast %41 : vector<1x32x32xbf16> to vector<32x32xbf16>
    %cst_19 = arith.constant dense<0.000000e+00> : vector<8x32xf32>
    %43 = tpu.matmul %40, %42, %cst_19 {dimension_numbers = #tpu.dot_dimension_numbers<[1], [0], [0], [1], [0, 0, 1, 1], [], []>} : vector<8x32xbf16>, vector<32x32xbf16>, vector<8x32xf32> -> vector<8x32xf32>
    %c0_20 = arith.constant 0 : index
    %c0_21 = arith.constant 0 : index
    %44 = vector.load %arg7[%c0_20, %c0_21] : memref<2x32xf32, #tpu.memory_space<vmem>>, vector<1x32xf32>
    %45 = vector.shape_cast %44 : vector<1x32xf32> to vector<32xf32>
    %46 = vector.shape_cast %45 : vector<32xf32> to vector<1x32xf32>
    %47 = vector.broadcast %46 : vector<1x32xf32> to vector<8x32xf32>
    %48 = arith.addf %43, %47 : vector<8x32xf32>
    %49 = arith.addf %1, %48 : vector<8x32xf32>
    %c0_22 = arith.constant 0 : index
    %c0_23 = arith.constant 0 : index
    %50 = vector.load %arg8[%c0_22, %c0_23] : memref<2x32xf32, #tpu.memory_space<vmem>>, vector<1x32xf32>
    %51 = vector.shape_cast %50 : vector<1x32xf32> to vector<32xf32>
    %c0_24 = arith.constant 0 : index
    %c0_25 = arith.constant 0 : index
    %52 = vector.load %arg9[%c0_24, %c0_25] : memref<2x32xf32, #tpu.memory_space<vmem>>, vector<1x32xf32>
    %53 = vector.shape_cast %52 : vector<1x32xf32> to vector<32xf32>
    %cst_26 = arith.constant dense<0.000000e+00> : vector<8xf32>
    %54 = vector.multi_reduction <add>, %49, %cst_26 [1] : vector<8x32xf32> to vector<8xf32>
    %55 = vector.shape_cast %54 : vector<8xf32> to vector<8x1xf32>
    %cst_27 = arith.constant 3.200000e+01 : f32
    %56 = vector.broadcast %cst_27 : f32 to vector<8x1xf32>
    %57 = arith.divf %55, %56 : vector<8x1xf32>
    %58 = vector.broadcast %57 : vector<8x1xf32> to vector<8x32xf32>
    %59 = arith.subf %49, %58 : vector<8x32xf32>
    %60 = arith.mulf %59, %59 : vector<8x32xf32>
    %cst_28 = arith.constant dense<0.000000e+00> : vector<8xf32>
    %61 = vector.multi_reduction <add>, %60, %cst_28 [1] : vector<8x32xf32> to vector<8xf32>
    %62 = vector.shape_cast %61 : vector<8xf32> to vector<8x1xf32>
    %cst_29 = arith.constant 3.200000e+01 : f32
    %63 = vector.broadcast %cst_29 : f32 to vector<8x1xf32>
    %64 = arith.divf %62, %63 : vector<8x1xf32>
    %65 = vector.broadcast %57 : vector<8x1xf32> to vector<8x32xf32>
    %66 = arith.subf %49, %65 : vector<8x32xf32>
    %cst_30 = arith.constant 9.99999974E-6 : f32
    %67 = vector.broadcast %cst_30 : f32 to vector<8x1xf32>
    %68 = arith.addf %64, %67 : vector<8x1xf32>
    %69 = math.rsqrt %68 : vector<8x1xf32>
    %70 = vector.broadcast %69 : vector<8x1xf32> to vector<8x32xf32>
    %71 = arith.mulf %66, %70 : vector<8x32xf32>
    %72 = vector.shape_cast %51 : vector<32xf32> to vector<1x32xf32>
    %73 = vector.broadcast %72 : vector<1x32xf32> to vector<8x32xf32>
    %74 = arith.mulf %71, %73 : vector<8x32xf32>
    %75 = vector.shape_cast %53 : vector<32xf32> to vector<1x32xf32>
    %76 = vector.broadcast %75 : vector<1x32xf32> to vector<8x32xf32>
    %77 = arith.addf %74, %76 : vector<8x32xf32>
    %78 = arith.truncf %77 : vector<8x32xf32> to vector<8x32xbf16>
    %c0_31 = arith.constant 0 : index
    %c0_32 = arith.constant 0 : index
    %c0_33 = arith.constant 0 : index
    %79 = vector.load %arg12[%c0_31, %c0_32, %c0_33] : memref<2x32x64xbf16, #tpu.memory_space<vmem>>, vector<1x32x64xbf16>
    %80 = vector.shape_cast %79 : vector<1x32x64xbf16> to vector<32x64xbf16>
    %cst_34 = arith.constant dense<0.000000e+00> : vector<8x64xf32>
    %81 = tpu.matmul %78, %80, %cst_34 {dimension_numbers = #tpu.dot_dimension_numbers<[1], [0], [0], [1], [0, 0, 1, 1], [], []>} : vector<8x32xbf16>, vector<32x64xbf16>, vector<8x64xf32> -> vector<8x64xf32>
    %c0_35 = arith.constant 0 : index
    %c0_36 = arith.constant 0 : index
    %82 = vector.load %arg13[%c0_35, %c0_36] : memref<2x64xf32, #tpu.memory_space<vmem>>, vector<1x64xf32>
    %83 = vector.shape_cast %82 : vector<1x64xf32> to vector<64xf32>
    %84 = vector.shape_cast %83 : vector<64xf32> to vector<1x64xf32>
    %85 = vector.broadcast %84 : vector<1x64xf32> to vector<8x64xf32>
    %86 = arith.addf %81, %85 : vector<8x64xf32>
    %cst_37 = arith.constant 5.000000e-01 : f32
    %87 = vector.broadcast %cst_37 : f32 to vector<8x64xf32>
    %88 = arith.mulf %87, %86 : vector<8x64xf32>
    %cst_38 = arith.constant 4.471500e-02 : f32
    %89 = vector.broadcast %cst_38 : f32 to vector<8x64xf32>
    %90 = arith.mulf %89, %86 : vector<8x64xf32>
    %91 = arith.mulf %90, %86 : vector<8x64xf32>
    %92 = arith.mulf %91, %86 : vector<8x64xf32>
    %93 = arith.addf %86, %92 : vector<8x64xf32>
    %cst_39 = arith.constant 0.797884583 : f32
    %94 = vector.broadcast %cst_39 : f32 to vector<8x64xf32>
    %95 = arith.mulf %94, %93 : vector<8x64xf32>
    %96 = math.tanh %95 : vector<8x64xf32>
    %cst_40 = arith.constant 1.000000e+00 : f32
    %97 = vector.broadcast %cst_40 : f32 to vector<8x64xf32>
    %98 = arith.addf %97, %96 : vector<8x64xf32>
    %99 = arith.mulf %88, %98 : vector<8x64xf32>
    %100 = arith.truncf %99 : vector<8x64xf32> to vector<8x64xbf16>
    %c0_41 = arith.constant 0 : index
    %c0_42 = arith.constant 0 : index
    %c0_43 = arith.constant 0 : index
    %101 = vector.load %arg14[%c0_41, %c0_42, %c0_43] : memref<2x64x32xbf16, #tpu.memory_space<vmem>>, vector<1x64x32xbf16>
    %102 = vector.shape_cast %101 : vector<1x64x32xbf16> to vector<64x32xbf16>
    %cst_44 = arith.constant dense<0.000000e+00> : vector<8x32xf32>
    %103 = tpu.matmul %100, %102, %cst_44 {dimension_numbers = #tpu.dot_dimension_numbers<[1], [0], [0], [1], [0, 0, 1, 1], [], []>} : vector<8x64xbf16>, vector<64x32xbf16>, vector<8x32xf32> -> vector<8x32xf32>
    %c0_45 = arith.constant 0 : index
    %c0_46 = arith.constant 0 : index
    %104 = vector.load %arg15[%c0_45, %c0_46] : memref<2x32xf32, #tpu.memory_space<vmem>>, vector<1x32xf32>
    %105 = vector.shape_cast %104 : vector<1x32xf32> to vector<32xf32>
    %106 = vector.shape_cast %105 : vector<32xf32> to vector<1x32xf32>
    %107 = vector.broadcast %106 : vector<1x32xf32> to vector<8x32xf32>
    %108 = arith.addf %103, %107 : vector<8x32xf32>
    %109 = arith.addf %77, %108 : vector<8x32xf32>
    %c0_47 = arith.constant 0 : index
    %c0_48 = arith.constant 0 : index
    %110 = vector.load %arg10[%c0_47, %c0_48] : memref<2x32xf32, #tpu.memory_space<vmem>>, vector<1x32xf32>
    %111 = vector.shape_cast %110 : vector<1x32xf32> to vector<32xf32>
    %c0_49 = arith.constant 0 : index
    %c0_50 = arith.constant 0 : index
    %112 = vector.load %arg11[%c0_49, %c0_50] : memref<2x32xf32, #tpu.memory_space<vmem>>, vector<1x32xf32>
    %113 = vector.shape_cast %112 : vector<1x32xf32> to vector<32xf32>
    %cst_51 = arith.constant dense<0.000000e+00> : vector<8xf32>
    %114 = vector.multi_reduction <add>, %109, %cst_51 [1] : vector<8x32xf32> to vector<8xf32>
    %115 = vector.shape_cast %114 : vector<8xf32> to vector<8x1xf32>
    %cst_52 = arith.constant 3.200000e+01 : f32
    %116 = vector.broadcast %cst_52 : f32 to vector<8x1xf32>
    %117 = arith.divf %115, %116 : vector<8x1xf32>
    %118 = vector.broadcast %117 : vector<8x1xf32> to vector<8x32xf32>
    %119 = arith.subf %109, %118 : vector<8x32xf32>
    %120 = arith.mulf %119, %119 : vector<8x32xf32>
    %cst_53 = arith.constant dense<0.000000e+00> : vector<8xf32>
    %121 = vector.multi_reduction <add>, %120, %cst_53 [1] : vector<8x32xf32> to vector<8xf32>
    %122 = vector.shape_cast %121 : vector<8xf32> to vector<8x1xf32>
    %cst_54 = arith.constant 3.200000e+01 : f32
    %123 = vector.broadcast %cst_54 : f32 to vector<8x1xf32>
    %124 = arith.divf %122, %123 : vector<8x1xf32>
    %125 = vector.broadcast %117 : vector<8x1xf32> to vector<8x32xf32>
    %126 = arith.subf %109, %125 : vector<8x32xf32>
    %cst_55 = arith.constant 9.99999974E-6 : f32
    %127 = vector.broadcast %cst_55 : f32 to vector<8x1xf32>
    %128 = arith.addf %124, %127 : vector<8x1xf32>
    %129 = math.rsqrt %128 : vector<8x1xf32>
    %130 = vector.broadcast %129 : vector<8x1xf32> to vector<8x32xf32>
    %131 = arith.mulf %126, %130 : vector<8x32xf32>
    %132 = vector.shape_cast %111 : vector<32xf32> to vector<1x32xf32>
    %133 = vector.broadcast %132 : vector<1x32xf32> to vector<8x32xf32>
    %134 = arith.mulf %131, %133 : vector<8x32xf32>
    %135 = vector.shape_cast %113 : vector<32xf32> to vector<1x32xf32>
    %136 = vector.broadcast %135 : vector<1x32xf32> to vector<8x32xf32>
    %137 = arith.addf %134, %136 : vector<8x32xf32>
    %138 = arith.truncf %137 : vector<8x32xf32> to vector<8x32xbf16>
    %c1 = arith.constant 1 : index
    %c0_56 = arith.constant 0 : index
    %c0_57 = arith.constant 0 : index
    %139 = vector.load %arg4[%c1, %c0_56, %c0_57] : memref<2x32x96xbf16, #tpu.memory_space<vmem>>, vector<1x32x96xbf16>
    %140 = vector.shape_cast %139 : vector<1x32x96xbf16> to vector<32x96xbf16>
    %cst_58 = arith.constant dense<0.000000e+00> : vector<8x96xf32>
    %141 = tpu.matmul %138, %140, %cst_58 {dimension_numbers = #tpu.dot_dimension_numbers<[1], [0], [0], [1], [0, 0, 1, 1], [], []>} : vector<8x32xbf16>, vector<32x96xbf16>, vector<8x96xf32> -> vector<8x96xf32>
    %c1_59 = arith.constant 1 : index
    %c0_60 = arith.constant 0 : index
    %142 = vector.load %arg5[%c1_59, %c0_60] : memref<2x96xf32, #tpu.memory_space<vmem>>, vector<1x96xf32>
    %143 = vector.shape_cast %142 : vector<1x96xf32> to vector<96xf32>
    %144 = vector.shape_cast %143 : vector<96xf32> to vector<1x96xf32>
    %145 = vector.broadcast %144 : vector<1x96xf32> to vector<8x96xf32>
    %146 = arith.addf %141, %145 : vector<8x96xf32>
    %147 = vector.extract_strided_slice %146 {offsets = [0, 0], sizes = [8, 32], strides = [1, 1]} : vector<8x96xf32> to vector<8x32xf32>
    %148 = vector.extract_strided_slice %146 {offsets = [0, 32], sizes = [8, 32], strides = [1, 1]} : vector<8x96xf32> to vector<8x32xf32>
    %149 = vector.extract_strided_slice %146 {offsets = [0, 64], sizes = [8, 32], strides = [1, 1]} : vector<8x96xf32> to vector<8x32xf32>
    %150 = tpu.concatenate %148, %148, %148, %148 in 0 : vector<8x32xf32>, vector<8x32xf32>, vector<8x32xf32>, vector<8x32xf32> -> vector<32x32xf32>
    %151 = arith.mulf %150, %4 : vector<32x32xf32>
    %152 = arith.truncf %151 : vector<32x32xf32> to vector<32x32xbf16>
    %153 = tpu.concatenate %149, %149, %149, %149 in 0 : vector<8x32xf32>, vector<8x32xf32>, vector<8x32xf32>, vector<8x32xf32> -> vector<32x32xf32>
    %154 = arith.mulf %153, %4 : vector<32x32xf32>
    %155 = arith.truncf %154 : vector<32x32xf32> to vector<32x32xbf16>
    %156 = arith.truncf %147 : vector<8x32xf32> to vector<8x32xbf16>
    %cst_61 = arith.constant dense<0.000000e+00> : vector<8x32xf32>
    %157 = tpu.matmul %156, %152, %cst_61 {dimension_numbers = #tpu.dot_dimension_numbers<[1], [1], [0], [0], [0, 0, 1, 0], [], []>} : vector<8x32xbf16>, vector<32x32xbf16>, vector<8x32xf32> -> vector<8x32xf32>
    %158 = arith.addf %157, %3 : vector<8x32xf32>
    %159 = vector.shape_cast %158 : vector<8x32xf32> to vector<8x4x8xf32>
    %cst_62 = arith.constant dense<0xFF800000> : vector<8x4xf32>
    %160 = vector.multi_reduction <maximumf>, %159, %cst_62 [2] : vector<8x4x8xf32> to vector<8x4xf32>
    %161 = vector.shape_cast %160 : vector<8x4xf32> to vector<8x4x1xf32>
    %162 = vector.broadcast %161 : vector<8x4x1xf32> to vector<8x4x8xf32>
    %163 = arith.subf %159, %162 : vector<8x4x8xf32>
    %164 = math.exp %163 : vector<8x4x8xf32>
    %cst_63 = arith.constant dense<0.000000e+00> : vector<8x4xf32>
    %165 = vector.multi_reduction <add>, %164, %cst_63 [2] : vector<8x4x8xf32> to vector<8x4xf32>
    %166 = vector.shape_cast %165 : vector<8x4xf32> to vector<8x4x1xf32>
    %167 = tpu.reciprocal %166 {approx = true} : vector<8x4x1xf32> -> vector<8x4x1xf32>
    %168 = vector.broadcast %167 : vector<8x4x1xf32> to vector<8x4x8xf32>
    %169 = arith.mulf %164, %168 : vector<8x4x8xf32>
    %170 = vector.shape_cast %169 : vector<8x4x8xf32> to vector<8x32xf32>
    %171 = arith.truncf %170 : vector<8x32xf32> to vector<8x32xbf16>
    %cst_64 = arith.constant dense<0.000000e+00> : vector<8x32xf32>
    %172 = tpu.matmul %171, %155, %cst_64 {dimension_numbers = #tpu.dot_dimension_numbers<[1], [0], [0], [1], [0, 0, 1, 1], [], []>} : vector<8x32xbf16>, vector<32x32xbf16>, vector<8x32xf32> -> vector<8x32xf32>
    %173 = arith.truncf %172 : vector<8x32xf32> to vector<8x32xbf16>
    %c1_65 = arith.constant 1 : index
    %c0_66 = arith.constant 0 : index
    %c0_67 = arith.constant 0 : index
    %174 = vector.load %arg6[%c1_65, %c0_66, %c0_67] : memref<2x32x32xbf16, #tpu.memory_space<vmem>>, vector<1x32x32xbf16>
    %175 = vector.shape_cast %174 : vector<1x32x32xbf16> to vector<32x32xbf16>
    %cst_68 = arith.constant dense<0.000000e+00> : vector<8x32xf32>
    %176 = tpu.matmul %173, %175, %cst_68 {dimension_numbers = #tpu.dot_dimension_numbers<[1], [0], [0], [1], [0, 0, 1, 1], [], []>} : vector<8x32xbf16>, vector<32x32xbf16>, vector<8x32xf32> -> vector<8x32xf32>
    %c1_69 = arith.constant 1 : index
    %c0_70 = arith.constant 0 : index
    %177 = vector.load %arg7[%c1_69, %c0_70] : memref<2x32xf32, #tpu.memory_space<vmem>>, vector<1x32xf32>
    %178 = vector.shape_cast %177 : vector<1x32xf32> to vector<32xf32>
    %179 = vector.shape_cast %178 : vector<32xf32> to vector<1x32xf32>
    %180 = vector.broadcast %179 : vector<1x32xf32> to vector<8x32xf32>
    %181 = arith.addf %176, %180 : vector<8x32xf32>
    %182 = arith.addf %137, %181 : vector<8x32xf32>
    %c1_71 = arith.constant 1 : index
    %c0_72 = arith.constant 0 : index
    %183 = vector.load %arg8[%c1_71, %c0_72] : memref<2x32xf32, #tpu.memory_space<vmem>>, vector<1x32xf32>
    %184 = vector.shape_cast %183 : vector<1x32xf32> to vector<32xf32>
    %c1_73 = arith.constant 1 : index
    %c0_74 = arith.constant 0 : index
    %185 = vector.load %arg9[%c1_73, %c0_74] : memref<2x32xf32, #tpu.memory_space<vmem>>, vector<1x32xf32>
    %186 = vector.shape_cast %185 : vector<1x32xf32> to vector<32xf32>
    %cst_75 = arith.constant dense<0.000000e+00> : vector<8xf32>
    %187 = vector.multi_reduction <add>, %182, %cst_75 [1] : vector<8x32xf32> to vector<8xf32>
    %188 = vector.shape_cast %187 : vector<8xf32> to vector<8x1xf32>
    %cst_76 = arith.constant 3.200000e+01 : f32
    %189 = vector.broadcast %cst_76 : f32 to vector<8x1xf32>
    %190 = arith.divf %188, %189 : vector<8x1xf32>
    %191 = vector.broadcast %190 : vector<8x1xf32> to vector<8x32xf32>
    %192 = arith.subf %182, %191 : vector<8x32xf32>
    %193 = arith.mulf %192, %192 : vector<8x32xf32>
    %cst_77 = arith.constant dense<0.000000e+00> : vector<8xf32>
    %194 = vector.multi_reduction <add>, %193, %cst_77 [1] : vector<8x32xf32> to vector<8xf32>
    %195 = vector.shape_cast %194 : vector<8xf32> to vector<8x1xf32>
    %cst_78 = arith.constant 3.200000e+01 : f32
    %196 = vector.broadcast %cst_78 : f32 to vector<8x1xf32>
    %197 = arith.divf %195, %196 : vector<8x1xf32>
    %198 = vector.broadcast %190 : vector<8x1xf32> to vector<8x32xf32>
    %199 = arith.subf %182, %198 : vector<8x32xf32>
    %cst_79 = arith.constant 9.99999974E-6 : f32
    %200 = vector.broadcast %cst_79 : f32 to vector<8x1xf32>
    %201 = arith.addf %197, %200 : vector<8x1xf32>
    %202 = math.rsqrt %201 : vector<8x1xf32>
    %203 = vector.broadcast %202 : vector<8x1xf32> to vector<8x32xf32>
    %204 = arith.mulf %199, %203 : vector<8x32xf32>
    %205 = vector.shape_cast %184 : vector<32xf32> to vector<1x32xf32>
    %206 = vector.broadcast %205 : vector<1x32xf32> to vector<8x32xf32>
    %207 = arith.mulf %204, %206 : vector<8x32xf32>
    %208 = vector.shape_cast %186 : vector<32xf32> to vector<1x32xf32>
    %209 = vector.broadcast %208 : vector<1x32xf32> to vector<8x32xf32>
    %210 = arith.addf %207, %209 : vector<8x32xf32>
    %211 = arith.truncf %210 : vector<8x32xf32> to vector<8x32xbf16>
    %c1_80 = arith.constant 1 : index
    %c0_81 = arith.constant 0 : index
    %c0_82 = arith.constant 0 : index
    %212 = vector.load %arg12[%c1_80, %c0_81, %c0_82] : memref<2x32x64xbf16, #tpu.memory_space<vmem>>, vector<1x32x64xbf16>
    %213 = vector.shape_cast %212 : vector<1x32x64xbf16> to vector<32x64xbf16>
    %cst_83 = arith.constant dense<0.000000e+00> : vector<8x64xf32>
    %214 = tpu.matmul %211, %213, %cst_83 {dimension_numbers = #tpu.dot_dimension_numbers<[1], [0], [0], [1], [0, 0, 1, 1], [], []>} : vector<8x32xbf16>, vector<32x64xbf16>, vector<8x64xf32> -> vector<8x64xf32>
    %c1_84 = arith.constant 1 : index
    %c0_85 = arith.constant 0 : index
    %215 = vector.load %arg13[%c1_84, %c0_85] : memref<2x64xf32, #tpu.memory_space<vmem>>, vector<1x64xf32>
    %216 = vector.shape_cast %215 : vector<1x64xf32> to vector<64xf32>
    %217 = vector.shape_cast %216 : vector<64xf32> to vector<1x64xf32>
    %218 = vector.broadcast %217 : vector<1x64xf32> to vector<8x64xf32>
    %219 = arith.addf %214, %218 : vector<8x64xf32>
    %cst_86 = arith.constant 5.000000e-01 : f32
    %220 = vector.broadcast %cst_86 : f32 to vector<8x64xf32>
    %221 = arith.mulf %220, %219 : vector<8x64xf32>
    %cst_87 = arith.constant 4.471500e-02 : f32
    %222 = vector.broadcast %cst_87 : f32 to vector<8x64xf32>
    %223 = arith.mulf %222, %219 : vector<8x64xf32>
    %224 = arith.mulf %223, %219 : vector<8x64xf32>
    %225 = arith.mulf %224, %219 : vector<8x64xf32>
    %226 = arith.addf %219, %225 : vector<8x64xf32>
    %cst_88 = arith.constant 0.797884583 : f32
    %227 = vector.broadcast %cst_88 : f32 to vector<8x64xf32>
    %228 = arith.mulf %227, %226 : vector<8x64xf32>
    %229 = math.tanh %228 : vector<8x64xf32>
    %cst_89 = arith.constant 1.000000e+00 : f32
    %230 = vector.broadcast %cst_89 : f32 to vector<8x64xf32>
    %231 = arith.addf %230, %229 : vector<8x64xf32>
    %232 = arith.mulf %221, %231 : vector<8x64xf32>
    %233 = arith.truncf %232 : vector<8x64xf32> to vector<8x64xbf16>
    %c1_90 = arith.constant 1 : index
    %c0_91 = arith.constant 0 : index
    %c0_92 = arith.constant 0 : index
    %234 = vector.load %arg14[%c1_90, %c0_91, %c0_92] : memref<2x64x32xbf16, #tpu.memory_space<vmem>>, vector<1x64x32xbf16>
    %235 = vector.shape_cast %234 : vector<1x64x32xbf16> to vector<64x32xbf16>
    %cst_93 = arith.constant dense<0.000000e+00> : vector<8x32xf32>
    %236 = tpu.matmul %233, %235, %cst_93 {dimension_numbers = #tpu.dot_dimension_numbers<[1], [0], [0], [1], [0, 0, 1, 1], [], []>} : vector<8x64xbf16>, vector<64x32xbf16>, vector<8x32xf32> -> vector<8x32xf32>
    %c1_94 = arith.constant 1 : index
    %c0_95 = arith.constant 0 : index
    %237 = vector.load %arg15[%c1_94, %c0_95] : memref<2x32xf32, #tpu.memory_space<vmem>>, vector<1x32xf32>
    %238 = vector.shape_cast %237 : vector<1x32xf32> to vector<32xf32>
    %239 = vector.shape_cast %238 : vector<32xf32> to vector<1x32xf32>
    %240 = vector.broadcast %239 : vector<1x32xf32> to vector<8x32xf32>
    %241 = arith.addf %236, %240 : vector<8x32xf32>
    %242 = arith.addf %210, %241 : vector<8x32xf32>
    %c1_96 = arith.constant 1 : index
    %c0_97 = arith.constant 0 : index
    %243 = vector.load %arg10[%c1_96, %c0_97] : memref<2x32xf32, #tpu.memory_space<vmem>>, vector<1x32xf32>
    %244 = vector.shape_cast %243 : vector<1x32xf32> to vector<32xf32>
    %c1_98 = arith.constant 1 : index
    %c0_99 = arith.constant 0 : index
    %245 = vector.load %arg11[%c1_98, %c0_99] : memref<2x32xf32, #tpu.memory_space<vmem>>, vector<1x32xf32>
    %246 = vector.shape_cast %245 : vector<1x32xf32> to vector<32xf32>
    %cst_100 = arith.constant dense<0.000000e+00> : vector<8xf32>
    %247 = vector.multi_reduction <add>, %242, %cst_100 [1] : vector<8x32xf32> to vector<8xf32>
    %248 = vector.shape_cast %247 : vector<8xf32> to vector<8x1xf32>
    %cst_101 = arith.constant 3.200000e+01 : f32
    %249 = vector.broadcast %cst_101 : f32 to vector<8x1xf32>
    %250 = arith.divf %248, %249 : vector<8x1xf32>
    %251 = vector.broadcast %250 : vector<8x1xf32> to vector<8x32xf32>
    %252 = arith.subf %242, %251 : vector<8x32xf32>
    %253 = arith.mulf %252, %252 : vector<8x32xf32>
    %cst_102 = arith.constant dense<0.000000e+00> : vector<8xf32>
    %254 = vector.multi_reduction <add>, %253, %cst_102 [1] : vector<8x32xf32> to vector<8xf32>
    %255 = vector.shape_cast %254 : vector<8xf32> to vector<8x1xf32>
    %cst_103 = arith.constant 3.200000e+01 : f32
    %256 = vector.broadcast %cst_103 : f32 to vector<8x1xf32>
    %257 = arith.divf %255, %256 : vector<8x1xf32>
    %258 = vector.broadcast %250 : vector<8x1xf32> to vector<8x32xf32>
    %259 = arith.subf %242, %258 : vector<8x32xf32>
    %cst_104 = arith.constant 9.99999974E-6 : f32
    %260 = vector.broadcast %cst_104 : f32 to vector<8x1xf32>
    %261 = arith.addf %257, %260 : vector<8x1xf32>
    %262 = math.rsqrt %261 : vector<8x1xf32>
    %263 = vector.broadcast %262 : vector<8x1xf32> to vector<8x32xf32>
    %264 = arith.mulf %259, %263 : vector<8x32xf32>
    %265 = vector.shape_cast %244 : vector<32xf32> to vector<1x32xf32>
    %266 = vector.broadcast %265 : vector<1x32xf32> to vector<8x32xf32>
    %267 = arith.mulf %264, %266 : vector<8x32xf32>
    %268 = vector.shape_cast %246 : vector<32xf32> to vector<1x32xf32>
    %269 = vector.broadcast %268 : vector<1x32xf32> to vector<8x32xf32>
    %270 = arith.addf %267, %269 : vector<8x32xf32>
    %c0_105 = arith.constant 0 : index
    %c0_106 = arith.constant 0 : index
    %c0_107 = arith.constant 0 : index
    %271 = vector.load %arg16[%c0_105, %c0_106, %c0_107] : memref<1x8x32xf32, #tpu.memory_space<vmem>>, vector<1x8x32xf32>
    %272 = vector.shape_cast %271 : vector<1x8x32xf32> to vector<8x32xf32>
    %273 = vector.shape_cast %270 : vector<8x32xf32> to vector<1x8x32xf32>
    tpu.vector_store %arg16[%c0_105, %c0_106, %c0_107], %273 {strides = array<i32>} : memref<1x8x32xf32, #tpu.memory_space<vmem>>, vector<1x8x32xf32>,
    return
  }
  func.func @transform_0(%arg0: i32) -> (i32, i32, i32) {
    %c0_i32 = arith.constant 0 : i32
    %c0_i32_0 = arith.constant 0 : i32
    %c0_i32_1 = arith.constant 0 : i32
    return %arg0, %c0_i32, %c0_i32_0 : i32, i32, i32
  }
  func.func @transform_1(%arg0: i32) -> (i32, i32, i32) {
    %c0_i32 = arith.constant 0 : i32
    %c0_i32_0 = arith.constant 0 : i32
    %c0_i32_1 = arith.constant 0 : i32
    return %arg0, %c0_i32, %c0_i32_0 : i32, i32, i32
  }
  func.func @transform_2(%arg0: i32) -> (i32, i32) {
    %c0_i32 = arith.constant 0 : i32
    %c0_i32_0 = arith.constant 0 : i32
    %c0_i32_1 = arith.constant 0 : i32
    return %c0_i32, %c0_i32_0 : i32, i32
  }
  func.func @transform_3(%arg0: i32) -> (i32, i32, i32) {
    %c0_i32 = arith.constant 0 : i32
    %c0_i32_0 = arith.constant 0 : i32
    %c0_i32_1 = arith.constant 0 : i32
    %c0_i32_2 = arith.constant 0 : i32
    return %c0_i32, %c0_i32_0, %c0_i32_1 : i32, i32, i32
  }
  func.func @transform_4(%arg0: i32) -> (i32, i32) {
    %c0_i32 = arith.constant 0 : i32
    %c0_i32_0 = arith.constant 0 : i32
    %c0_i32_1 = arith.constant 0 : i32
    return %c0_i32, %c0_i32_0 : i32, i32
  }
  func.func @transform_5(%arg0: i32) -> (i32, i32, i32) {
    %c0_i32 = arith.constant 0 : i32
    %c0_i32_0 = arith.constant 0 : i32
    %c0_i32_1 = arith.constant 0 : i32
    %c0_i32_2 = arith.constant 0 : i32
    return %c0_i32, %c0_i32_0, %c0_i32_1 : i32, i32, i32
  }
  func.func @transform_6(%arg0: i32) -> (i32, i32) {
    %c0_i32 = arith.constant 0 : i32
    %c0_i32_0 = arith.constant 0 : i32
    %c0_i32_1 = arith.constant 0 : i32
    return %c0_i32, %c0_i32_0 : i32, i32
  }
  func.func @transform_7(%arg0: i32) -> (i32, i32) {
    %c0_i32 = arith.constant 0 : i32
    %c0_i32_0 = arith.constant 0 : i32
    %c0_i32_1 = arith.constant 0 : i32
    return %c0_i32, %c0_i32_0 : i32, i32
  }
  func.func @transform_8(%arg0: i32) -> (i32, i32) {
    %c0_i32 = arith.constant 0 : i32
    %c0_i32_0 = arith.constant 0 : i32
    %c0_i32_1 = arith.constant 0 : i32
    return %c0_i32, %c0_i32_0 : i32, i32
  }
  func.func @transform_9(%arg0: i32) -> (i32, i32) {
    %c0_i32 = arith.constant 0 : i32
    %c0_i32_0 = arith.constant 0 : i32
    %c0_i32_1 = arith.constant 0 : i32
    return %c0_i32, %c0_i32_0 : i32, i32
  }
  func.func @transform_10(%arg0: i32) -> (i32, i32) {
    %c0_i32 = arith.constant 0 : i32
    %c0_i32_0 = arith.constant 0 : i32
    %c0_i32_1 = arith.constant 0 : i32
    return %c0_i32, %c0_i32_0 : i32, i32
  }
  func.func @transform_11(%arg0: i32) -> (i32, i32, i32) {
    %c0_i32 = arith.constant 0 : i32
    %c0_i32_0 = arith.constant 0 : i32
    %c0_i32_1 = arith.constant 0 : i32
    %c0_i32_2 = arith.constant 0 : i32
    return %c0_i32, %c0_i32_0, %c0_i32_1 : i32, i32, i32
  }
  func.func @transform_12(%arg0: i32) -> (i32, i32) {
    %c0_i32 = arith.constant 0 : i32
    %c0_i32_0 = arith.constant 0 : i32
    %c0_i32_1 = arith.constant 0 : i32
    return %c0_i32, %c0_i32_0 : i32, i32
  }
  func.func @transform_13(%arg0: i32) -> (i32, i32, i32) {
    %c0_i32 = arith.constant 0 : i32
    %c0_i32_0 = arith.constant 0 : i32
    %c0_i32_1 = arith.constant 0 : i32
    %c0_i32_2 = arith.constant 0 : i32
    return %c0_i32, %c0_i32_0, %c0_i32_1 : i32, i32, i32
  }
  func.func @transform_14(%arg0: i32) -> (i32, i32) {
    %c0_i32 = arith.constant 0 : i32
    %c0_i32_0 = arith.constant 0 : i32
    %c0_i32_1 = arith.constant 0 : i32
    return %c0_i32, %c0_i32_0 : i32, i32
  }
  func.func @transform_15(%arg0: i32) -> (i32, i32, i32) {
    %c0_i32 = arith.constant 0 : i32
    %c0_i32_0 = arith.constant 0 : i32
    %c0_i32_1 = arith.constant 0 : i32
    return %arg0, %c0_i32, %c0_i32_0 : i32, i32, i32
  }
}

</mosaic_0001>

<llo_original>
// kernel: albert_layer_group.1
$region0: #{albert_layer_group.1}
  #allocation0 [shape = 'u32[]', space=smem, size = 0x4, offset = 0x4, fixed_abs, tag = 'smem constant byte address 0x4 - core index']
  #allocation1 [shape = 'u32[72,128]{1,0:T(1,128)}', space=vmem, size = 0x9000, scoped, tag = 'internal scratch']
  %s0 = inlined_call_operand.vmem [shape: f32[2,8,32], index: 0, kind: input, shape index: {}]
  %s1 = inlined_call_operand.vmem [shape: f32[2,8,32], index: 1, kind: input, shape index: {}]
  %s2 = inlined_call_operand.vmem [shape: f32[32,32], index: 2, kind: input, shape index: {}]
  %s3 = inlined_call_operand.hbm [shape: bf16[2,32,96], index: 3, kind: input, shape index: {}]
  %s4 = inlined_call_operand.vmem [shape: f32[2,96], index: 4, kind: input, shape index: {}]
  %s5 = inlined_call_operand.hbm [shape: bf16[2,32,32], index: 5, kind: input, shape index: {}]
  %s6 = inlined_call_operand.hbm [shape: f32[2,32], index: 6, kind: input, shape index: {}]
  %s7 = inlined_call_operand.vmem [shape: f32[2,32], index: 7, kind: input, shape index: {}, may-alias: {7,9}]
  %s8 = inlined_call_operand.vmem [shape: f32[2,32], index: 8, kind: input, shape index: {}, may-alias: {8,10}]
  %s9 = inlined_call_operand.vmem [shape: f32[2,32], index: 9, kind: input, shape index: {}, may-alias: {7,9}]
  %s10 = inlined_call_operand.vmem [shape: f32[2,32], index: 10, kind: input, shape index: {}, may-alias: {8,10}]
  %s11 = inlined_call_operand.hbm [shape: bf16[2,32,64], index: 11, kind: input, shape index: {}]
  %s12 = inlined_call_operand.hbm [shape: f32[2,64], index: 12, kind: input, shape index: {}]
  %s13 = inlined_call_operand.vmem [shape: bf16[2,64,32], index: 13, kind: input, shape index: {}]
  %s14 = inlined_call_operand.vmem [shape: f32[2,32], index: 14, kind: input, shape index: {}]
  %s15 = inlined_call_operand.hbm [shape: f32[2,8,32], index: 15, kind: output, shape index: {}]
  %s16 = sld [smem:[#allocation0]]
  $region113: #{albert_layer_group.1} parent=0
    _
  %s18 = ssub.s32 1, %s16
  %s19 = scalar_select 0, %s18, %s16
  $region1: #{albert_layer_group.1} parent=0
    #allocation2 [shape = 'u8[16384]{0}', space=vmem, size = 0x4000, scoped, tag = 'input window, operand 3, single buffered']
    #allocation3 [shape = 's32[2]{0}', space=sflag, size = 0x8, scoped, tag = 'scoped memory for albert_layer_group.1']
    #allocation4 [shape = 's32[2]{0}', space=sflag, size = 0x8, scoped, tag = 'scoped memory for albert_layer_group.1']
    #allocation5 [shape = 'u8[16384]{0}', space=vmem, size = 0x4000, scoped, tag = 'input window, operand 5, single buffered']
    #allocation6 [shape = 's32[1]{0}', space=sflag, size = 0x4, scoped, tag = 'scoped memory for albert_layer_group.1']
    #allocation7 [shape = 'u8[1024]{0}', space=vmem, size = 0x400, scoped, tag = 'input window, operand 6, single buffered']
    #allocation8 [shape = 'u8[16384]{0}', space=vmem, size = 0x4000, scoped, tag = 'input window, operand 11, single buffered']
    #allocation9 [shape = 's32[1]{0}', space=sflag, size = 0x4, scoped, tag = 'scoped memory for albert_layer_group.1']
    #allocation10 [shape = 'u8[1024]{0}', space=vmem, size = 0x400, scoped, tag = 'input window, operand 12, single buffered']
    #allocation11 [shape = 'u8[8192]{0}', space=vmem, size = 0x2000, scoped, tag = 'output window, operand 0']
    %20 = vsyncpa [#allocation3], 0
    %21 = vsyncpa [#allocation6], 0
    %22 = vsyncpa [#allocation9], 0
    %23 = vsyncpa [#allocation4], 0
    %s24 = scalar_lea.sflag [#allocation4], 1
    %25 = vsyncpa %s24, 0
    loop: start=0, step=1, limit=4
    $region2: #{albert_layer_group.1} parent=1 // loop_pre_header
      _
    $region3: #{albert_layer_group.1} parent=1 // loop_header
      %s27 = sphi 0, %s31
      %p28 = scmp.ge.s32.totalorder %s27, 4
      %s37 = sphi 0, %s39
      %s40 = sphi 0, %s37
      %s41 = sphi 0, %s40
      %s57 = sphi 0, %s41
      %s63 = sphi 0, %s65
      %s66 = sphi 0, %s63
      %s67 = sphi 0, %s66
      %s83 = sphi 0, %s67
      %s87 = sphi 0, %s87
      %s89 = sphi 0, %s87
      %s90 = sphi 0, %s89
      %s104 = sphi 0, %s90
      %s108 = sphi 0, %s108
      %s110 = sphi 0, %s108
      %s111 = sphi 0, %s110
      %s125 = sphi 0, %s111
      %s129 = sphi 0, %s129
      %s131 = sphi 0, %s129
      %s132 = sphi 0, %s131
      %s146 = sphi 0, %s132
      %s150 = sphi 0, %s150
      %s152 = sphi 0, %s150
      %s153 = sphi 0, %s152
      %s167 = sphi 0, %s153
      %s171 = sphi 0, %s171
      %s173 = sphi 0, %s171
      %s174 = sphi 0, %s173
      %s188 = sphi 0, %s174
      %s192 = sphi 0, %s192
      %s194 = sphi 0, %s192
      %s195 = sphi 0, %s194
      %s209 = sphi 0, %s195
      %s213 = sphi 0, %s213
      %s215 = sphi 0, %s213
      %s216 = sphi 0, %s215
      %s230 = sphi 0, %s216
      %s234 = sphi 0, %s234
      %s236 = sphi 0, %s234
      %s237 = sphi 0, %s236
      %s251 = sphi 0, %s237
      %s255 = sphi 0, %s255
      %s257 = sphi 0, %s255
      %s258 = sphi 0, %s257
      %s272 = sphi 0, %s258
      %s276 = sphi 0, %s276
      %s278 = sphi 0, %s276
      %s279 = sphi 0, %s278
      %s293 = sphi 0, %s279
      %s297 = sphi 0, %s297
      %s299 = sphi 0, %s297
      %s300 = sphi 0, %s299
      %s314 = sphi 0, %s300
      %s318 = sphi 0, %s318
      %s320 = sphi 0, %s318
      %s321 = sphi 0, %s320
      %s335 = sphi 0, %s321
      %s339 = sphi 0, %s339
      %s341 = sphi 0, %s339
      %s342 = sphi 0, %s341
      %s356 = sphi 0, %s342
      %s362 = sphi 0, %s364
      %s365 = sphi 0, %s362
      %s366 = sphi 0, %s365
      %s382 = sphi 0, %s366
    $region4: #{albert_layer_group.1} parent=1 // loop_header_branch
      %30 = sbr.rel (%p28) target = $region8
    $region5: #{albert_layer_group.1} parent=1 // loop_body
      %s32 = ssub.s32 %s27, 1
      %s33 = ssub.s32 %s27, 2
      %s34 = sadd.s32 %s27, 1
      %s35 = ssub.s32 %s27, %s34
      %p36 = scmp.eq.s32.totalorder %s35, 0
      %s38 = sadd.s32 %s37, 1
      %s39 = scalar_select %p36, %s37, %s38
      %p42 = pneg %p36
      %p43 = scmp.eq.s32.totalorder %s27, 1
      %p44 = por %p42, %p43
      %p45 = scmp.ne.s32.totalorder %s37, %s40
      %p46 = scmp.eq.s32.totalorder %s27, 0
      %p47 = por %p45, %p46
      %p48 = scmp.ne.s32.totalorder %s37, %s40
      %p49 = scmp.eq.s32.totalorder %s32, 1
      %p50 = por %p48, %p49
      %p51 = scmp.ne.s32.totalorder %s40, %s41
      %p52 = scmp.eq.s32.totalorder %s32, 0
      %p53 = por %p51, %p52
      %p54 = scmp.ne.s32.totalorder %s40, %s41
      %p55 = scmp.eq.s32.totalorder %s33, 1
      %p56 = por %p54, %p55
      %p58 = scmp.ne.s32.totalorder %s41, %s57
      %p59 = scmp.eq.s32.totalorder %s33, 0
      %p60 = por %p58, %p59
      %s61 = ssub.s32 %s27, %s34
      %p62 = scmp.eq.s32.totalorder %s61, 0
      %s64 = sadd.s32 %s63, 1
      %s65 = scalar_select %p62, %s63, %s64
      %p68 = pneg %p62
      %p69 = scmp.eq.s32.totalorder %s27, 1
      %p70 = por %p68, %p69
      %p71 = scmp.ne.s32.totalorder %s63, %s66
      %p72 = scmp.eq.s32.totalorder %s27, 0
      %p73 = por %p71, %p72
      %p74 = scmp.ne.s32.totalorder %s63, %s66
      %p75 = scmp.eq.s32.totalorder %s32, 1
      %p76 = por %p74, %p75
      %p77 = scmp.ne.s32.totalorder %s66, %s67
      %p78 = scmp.eq.s32.totalorder %s32, 0
      %p79 = por %p77, %p78
      %p80 = scmp.ne.s32.totalorder %s66, %s67
      %p81 = scmp.eq.s32.totalorder %s33, 1
      %p82 = por %p80, %p81
      %p84 = scmp.ne.s32.totalorder %s67, %s83
      %p85 = scmp.eq.s32.totalorder %s33, 0
      %p86 = por %p84, %p85
      %s88 = sadd.s32 %s87, 1
      %p91 = scmp.eq.s32.totalorder %s27, 1
      %p92 = scmp.ne.s32.totalorder %s87, %s89
      %p93 = scmp.eq.s32.totalorder %s27, 0
      %p94 = por %p92, %p93
      %p95 = scmp.ne.s32.totalorder %s87, %s89
      %p96 = scmp.eq.s32.totalorder %s32, 1
      %p97 = por %p95, %p96
      %p98 = scmp.ne.s32.totalorder %s89, %s90
      %p99 = scmp.eq.s32.totalorder %s32, 0
      %p100 = por %p98, %p99
      %p101 = scmp.ne.s32.totalorder %s89, %s90
      %p102 = scmp.eq.s32.totalorder %s33, 1
      %p103 = por %p101, %p102
      %p105 = scmp.ne.s32.totalorder %s90, %s104
      %p106 = scmp.eq.s32.totalorder %s33, 0
      %p107 = por %p105, %p106
      %s109 = sadd.s32 %s108, 1
      %p112 = scmp.eq.s32.totalorder %s27, 1
      %p113 = scmp.ne.s32.totalorder %s108, %s110
      %p114 = scmp.eq.s32.totalorder %s27, 0
      %p115 = por %p113, %p114
      %p116 = scmp.ne.s32.totalorder %s108, %s110
      %p117 = scmp.eq.s32.totalorder %s32, 1
      %p118 = por %p116, %p117
      %p119 = scmp.ne.s32.totalorder %s110, %s111
      %p120 = scmp.eq.s32.totalorder %s32, 0
      %p121 = por %p119, %p120
      %p122 = scmp.ne.s32.totalorder %s110, %s111
      %p123 = scmp.eq.s32.totalorder %s33, 1
      %p124 = por %p122, %p123
      %p126 = scmp.ne.s32.totalorder %s111, %s125
      %p127 = scmp.eq.s32.totalorder %s33, 0
      %p128 = por %p126, %p127
      %s130 = sadd.s32 %s129, 1
      %p133 = scmp.eq.s32.totalorder %s27, 1
      %p134 = scmp.ne.s32.totalorder %s129, %s131
      %p135 = scmp.eq.s32.totalorder %s27, 0
      %p136 = por %p134, %p135
      %p137 = scmp.ne.s32.totalorder %s129, %s131
      %p138 = scmp.eq.s32.totalorder %s32, 1
      %p139 = por %p137, %p138
      %p140 = scmp.ne.s32.totalorder %s131, %s132
      %p141 = scmp.eq.s32.totalorder %s32, 0
      %p142 = por %p140, %p141
      %p143 = scmp.ne.s32.totalorder %s131, %s132
      %p144 = scmp.eq.s32.totalorder %s33, 1
      %p145 = por %p143, %p144
      %p147 = scmp.ne.s32.totalorder %s132, %s146
      %p148 = scmp.eq.s32.totalorder %s33, 0
      %p149 = por %p147, %p148
      %s151 = sadd.s32 %s150, 1
      %p154 = scmp.eq.s32.totalorder %s27, 1
      %p155 = scmp.ne.s32.totalorder %s150, %s152
      %p156 = scmp.eq.s32.totalorder %s27, 0
      %p157 = por %p155, %p156
      %p158 = scmp.ne.s32.totalorder %s150, %s152
      %p159 = scmp.eq.s32.totalorder %s32, 1
      %p160 = por %p158, %p159
      %p161 = scmp.ne.s32.totalorder %s152, %s153
      %p162 = scmp.eq.s32.totalorder %s32, 0
      %p163 = por %p161, %p162
      %p164 = scmp.ne.s32.totalorder %s152, %s153
      %p165 = scmp.eq.s32.totalorder %s33, 1
      %p166 = por %p164, %p165
      %p168 = scmp.ne.s32.totalorder %s153, %s167
      %p169 = scmp.eq.s32.totalorder %s33, 0
      %p170 = por %p168, %p169
      %s172 = sadd.s32 %s171, 1
      %p175 = scmp.eq.s32.totalorder %s27, 1
      %p176 = scmp.ne.s32.totalorder %s171, %s173
      %p177 = scmp.eq.s32.totalorder %s27, 0
      %p178 = por %p176, %p177
      %p179 = scmp.ne.s32.totalorder %s171, %s173
      %p180 = scmp.eq.s32.totalorder %s32, 1
      %p181 = por %p179, %p180
      %p182 = scmp.ne.s32.totalorder %s173, %s174
      %p183 = scmp.eq.s32.totalorder %s32, 0
      %p184 = por %p182, %p183
      %p185 = scmp.ne.s32.totalorder %s173, %s174
      %p186 = scmp.eq.s32.totalorder %s33, 1
      %p187 = por %p185, %p186
      %p189 = scmp.ne.s32.totalorder %s174, %s188
      %p190 = scmp.eq.s32.totalorder %s33, 0
      %p191 = por %p189, %p190
      %s193 = sadd.s32 %s192, 1
      %p196 = scmp.eq.s32.totalorder %s27, 1
      %p197 = scmp.ne.s32.totalorder %s192, %s194
      %p198 = scmp.eq.s32.totalorder %s27, 0
      %p199 = por %p197, %p198
      %p200 = scmp.ne.s32.totalorder %s192, %s194
      %p201 = scmp.eq.s32.totalorder %s32, 1
      %p202 = por %p200, %p201
      %p203 = scmp.ne.s32.totalorder %s194, %s195
      %p204 = scmp.eq.s32.totalorder %s32, 0
      %p205 = por %p203, %p204
      %p206 = scmp.ne.s32.totalorder %s194, %s195
      %p207 = scmp.eq.s32.totalorder %s33, 1
      %p208 = por %p206, %p207
      %p210 = scmp.ne.s32.totalorder %s195, %s209
      %p211 = scmp.eq.s32.totalorder %s33, 0
      %p212 = por %p210, %p211
      %s214 = sadd.s32 %s213, 1
      %p217 = scmp.eq.s32.totalorder %s27, 1
      %p218 = scmp.ne.s32.totalorder %s213, %s215
      %p219 = scmp.eq.s32.totalorder %s27, 0
      %p220 = por %p218, %p219
      %p221 = scmp.ne.s32.totalorder %s213, %s215
      %p222 = scmp.eq.s32.totalorder %s32, 1
      %p223 = por %p221, %p222
      %p224 = scmp.ne.s32.totalorder %s215, %s216
      %p225 = scmp.eq.s32.totalorder %s32, 0
      %p226 = por %p224, %p225
      %p227 = scmp.ne.s32.totalorder %s215, %s216
      %p228 = scmp.eq.s32.totalorder %s33, 1
      %p229 = por %p227, %p228
      %p231 = scmp.ne.s32.totalorder %s216, %s230
      %p232 = scmp.eq.s32.totalorder %s33, 0
      %p233 = por %p231, %p232
      %s235 = sadd.s32 %s234, 1
      %p238 = scmp.eq.s32.totalorder %s27, 1
      %p239 = scmp.ne.s32.totalorder %s234, %s236
      %p240 = scmp.eq.s32.totalorder %s27, 0
      %p241 = por %p239, %p240
      %p242 = scmp.ne.s32.totalorder %s234, %s236
      %p243 = scmp.eq.s32.totalorder %s32, 1
      %p244 = por %p242, %p243
      %p245 = scmp.ne.s32.totalorder %s236, %s237
      %p246 = scmp.eq.s32.totalorder %s32, 0
      %p247 = por %p245, %p246
      %p248 = scmp.ne.s32.totalorder %s236, %s237
      %p249 = scmp.eq.s32.totalorder %s33, 1
      %p250 = por %p248, %p249
      %p252 = scmp.ne.s32.totalorder %s237, %s251
      %p253 = scmp.eq.s32.totalorder %s33, 0
      %p254 = por %p252, %p253
      %s256 = sadd.s32 %s255, 1
      %p259 = scmp.eq.s32.totalorder %s27, 1
      %p260 = scmp.ne.s32.totalorder %s255, %s257
      %p261 = scmp.eq.s32.totalorder %s27, 0
      %p262 = por %p260, %p261
      %p263 = scmp.ne.s32.totalorder %s255, %s257
      %p264 = scmp.eq.s32.totalorder %s32, 1
      %p265 = por %p263, %p264
      %p266 = scmp.ne.s32.totalorder %s257, %s258
      %p267 = scmp.eq.s32.totalorder %s32, 0
      %p268 = por %p266, %p267
      %p269 = scmp.ne.s32.totalorder %s257, %s258
      %p270 = scmp.eq.s32.totalorder %s33, 1
      %p271 = por %p269, %p270
      %p273 = scmp.ne.s32.totalorder %s258, %s272
      %p274 = scmp.eq.s32.totalorder %s33, 0
      %p275 = por %p273, %p274
      %s277 = sadd.s32 %s276, 1
      %p280 = scmp.eq.s32.totalorder %s27, 1
      %p281 = scmp.ne.s32.totalorder %s276, %s278
      %p282 = scmp.eq.s32.totalorder %s27, 0
      %p283 = por %p281, %p282
      %p284 = scmp.ne.s32.totalorder %s276, %s278
      %p285 = scmp.eq.s32.totalorder %s32, 1
      %p286 = por %p284, %p285
      %p287 = scmp.ne.s32.totalorder %s278, %s279
      %p288 = scmp.eq.s32.totalorder %s32, 0
      %p289 = por %p287, %p288
      %p290 = scmp.ne.s32.totalorder %s278, %s279
      %p291 = scmp.eq.s32.totalorder %s33, 1
      %p292 = por %p290, %p291
      %p294 = scmp.ne.s32.totalorder %s279, %s293
      %p295 = scmp.eq.s32.totalorder %s33, 0
      %p296 = por %p294, %p295
      %s298 = sadd.s32 %s297, 1
      %p301 = scmp.eq.s32.totalorder %s27, 1
      %p302 = scmp.ne.s32.totalorder %s297, %s299
      %p303 = scmp.eq.s32.totalorder %s27, 0
      %p304 = por %p302, %p303
      %p305 = scmp.ne.s32.totalorder %s297, %s299
      %p306 = scmp.eq.s32.totalorder %s32, 1
      %p307 = por %p305, %p306
      %p308 = scmp.ne.s32.totalorder %s299, %s300
      %p309 = scmp.eq.s32.totalorder %s32, 0
      %p310 = por %p308, %p309
      %p311 = scmp.ne.s32.totalorder %s299, %s300
      %p312 = scmp.eq.s32.totalorder %s33, 1
      %p313 = por %p311, %p312
      %p315 = scmp.ne.s32.totalorder %s300, %s314
      %p316 = scmp.eq.s32.totalorder %s33, 0
      %p317 = por %p315, %p316
      %s319 = sadd.s32 %s318, 1
      %p322 = scmp.eq.s32.totalorder %s27, 1
      %p323 = scmp.ne.s32.totalorder %s318, %s320
      %p324 = scmp.eq.s32.totalorder %s27, 0
      %p325 = por %p323, %p324
      %p326 = scmp.ne.s32.totalorder %s318, %s320
      %p327 = scmp.eq.s32.totalorder %s32, 1
      %p328 = por %p326, %p327
      %p329 = scmp.ne.s32.totalorder %s320, %s321
      %p330 = scmp.eq.s32.totalorder %s32, 0
      %p331 = por %p329, %p330
      %p332 = scmp.ne.s32.totalorder %s320, %s321
      %p333 = scmp.eq.s32.totalorder %s33, 1
      %p334 = por %p332, %p333
      %p336 = scmp.ne.s32.totalorder %s321, %s335
      %p337 = scmp.eq.s32.totalorder %s33, 0
      %p338 = por %p336, %p337
      %s340 = sadd.s32 %s339, 1
      %p343 = scmp.eq.s32.totalorder %s27, 1
      %p344 = scmp.ne.s32.totalorder %s339, %s341
      %p345 = scmp.eq.s32.totalorder %s27, 0
      %p346 = por %p344, %p345
      %p347 = scmp.ne.s32.totalorder %s339, %s341
      %p348 = scmp.eq.s32.totalorder %s32, 1
      %p349 = por %p347, %p348
      %p350 = scmp.ne.s32.totalorder %s341, %s342
      %p351 = scmp.eq.s32.totalorder %s32, 0
      %p352 = por %p350, %p351
      %p353 = scmp.ne.s32.totalorder %s341, %s342
      %p354 = scmp.eq.s32.totalorder %s33, 1
      %p355 = por %p353, %p354
      %p357 = scmp.ne.s32.totalorder %s342, %s356
      %p358 = scmp.eq.s32.totalorder %s33, 0
      %p359 = por %p357, %p358
      %s360 = ssub.s32 %s27, %s34
      %p361 = scmp.eq.s32.totalorder %s360, 0
      %s363 = sadd.s32 %s362, 1
      %s364 = scalar_select %p361, %s362, %s363
      %p367 = pneg %p361
      %p368 = scmp.eq.s32.totalorder %s27, 1
      %p369 = por %p367, %p368
      %p370 = scmp.ne.s32.totalorder %s362, %s365
      %p371 = scmp.eq.s32.totalorder %s27, 0
      %p372 = por %p370, %p371
      %p373 = scmp.ne.s32.totalorder %s362, %s365
      %p374 = scmp.eq.s32.totalorder %s32, 1
      %p375 = por %p373, %p374
      %p376 = scmp.ne.s32.totalorder %s365, %s366
      %p377 = scmp.eq.s32.totalorder %s32, 0
      %p378 = por %p376, %p377
      %p379 = scmp.ne.s32.totalorder %s365, %s366
      %p380 = scmp.eq.s32.totalorder %s33, 1
      %p381 = por %p379, %p380
      %p383 = scmp.ne.s32.totalorder %s366, %s382
      %p384 = scmp.eq.s32.totalorder %s33, 0
      %p385 = por %p383, %p384
      %p386 = scmp.le.s32.totalorder 1, %s27
      %p387 = scmp.lt.s32.totalorder %s27, 3
      %p388 = pnand %p386, %p387
      %p389 = pneg %p388
      // Predicated region
      $region9: #{albert_layer_group.1} parent=5 // pred_check
        _
      $region10: #{albert_layer_group.1} parent=5 // pred_check_branch
        %391 = sbr.rel (%p388) target = $region12
      $region11: #{albert_layer_group.1} parent=5 // pred_region
        %s392 = ssub.s32 %s27, 1
        // Predicated region
        $region13: #{albert_layer_group.1} parent=11 // pred_check
          %p393 = pneg %p100
        $region14: #{albert_layer_group.1} parent=11 // pred_check_branch
          %395 = sbr.rel (%p393) target = $region16
        $region15: #{albert_layer_group.1} parent=11 // pred_region
          _
        $region16: #{albert_layer_group.1} parent=11 // pred_fallthru
          _
        // Predicated region
        $region17: #{albert_layer_group.1} parent=11 // pred_check
          %p396 = pneg %p121
        $region18: #{albert_layer_group.1} parent=11 // pred_check_branch
          %398 = sbr.rel (%p396) target = $region20
        $region19: #{albert_layer_group.1} parent=11 // pred_region
          %400 = vsyncadd [#allocation3], 0
          %s401 = sshll.u32 %s3, 4
          %s402 = int_to_ptr.hbm [resolvable:$true] %s401
          %s403 = sshll.u32 [#allocation2], 4
          %s404 = int_to_ptr.vmem [resolvable:$true] %s403
          %409 = dma.hbm_to_vmem [thread:$0]  %s402, 512, %s404, [#allocation3], 64, 64, 4
        $region20: #{albert_layer_group.1} parent=11 // pred_fallthru
          _
        // Predicated region
        $region21: #{albert_layer_group.1} parent=11 // pred_check
          %p410 = pneg %p142
        $region22: #{albert_layer_group.1} parent=11 // pred_check_branch
          %412 = sbr.rel (%p410) target = $region24
        $region23: #{albert_layer_group.1} parent=11 // pred_region
          _
        $region24: #{albert_layer_group.1} parent=11 // pred_fallthru
          _
        // Predicated region
        $region25: #{albert_layer_group.1} parent=11 // pred_check
          %p413 = pneg %p163
        $region26: #{albert_layer_group.1} parent=11 // pred_check_branch
          %415 = sbr.rel (%p413) target = $region28
        $region27: #{albert_layer_group.1} parent=11 // pred_region
          %417 = vsyncadd [#allocation6], 0
          %s418 = sshll.u32 %s5, 4
          %s419 = int_to_ptr.hbm [resolvable:$true] %s418
          %s420 = sshll.u32 [#allocation5], 4
          %s421 = int_to_ptr.vmem [resolvable:$true] %s420
          %426 = dma.hbm_to_vmem [thread:$0]  %s419, 512, %s421, [#allocation6], 64, 64, 4
        $region28: #{albert_layer_group.1} parent=11 // pred_fallthru
          _
        // Predicated region
        $region29: #{albert_layer_group.1} parent=11 // pred_check
          %p427 = pneg %p184
        $region30: #{albert_layer_group.1} parent=11 // pred_check_branch
          %429 = sbr.rel (%p427) target = $region32
        $region31: #{albert_layer_group.1} parent=11 // pred_region
          %431 = vsyncadd [#allocation6], 0
          %s433 = sshll.u32 %s6, 4
          %s434 = int_to_ptr.hbm [resolvable:$true] %s433
          %s435 = sshll.u32 [#allocation7], 4
          %s436 = int_to_ptr.vmem [resolvable:$true] %s435
          %438 = dma.hbm_to_vmem [thread:$0]  %s434, 32, %s436, [#allocation6]
        $region32: #{albert_layer_group.1} parent=11 // pred_fallthru
          _
        // Predicated region
        $region33: #{albert_layer_group.1} parent=11 // pred_check
          %p439 = pneg %p205
        $region34: #{albert_layer_group.1} parent=11 // pred_check_branch
          %441 = sbr.rel (%p439) target = $region36
        $region35: #{albert_layer_group.1} parent=11 // pred_region
          _
        $region36: #{albert_layer_group.1} parent=11 // pred_fallthru
          _
        // Predicated region
        $region37: #{albert_layer_group.1} parent=11 // pred_check
          %p442 = pneg %p226
        $region38: #{albert_layer_group.1} parent=11 // pred_check_branch
          %444 = sbr.rel (%p442) target = $region40
        $region39: #{albert_layer_group.1} parent=11 // pred_region
          _
        $region40: #{albert_layer_group.1} parent=11 // pred_fallthru
          _
        // Predicated region
        $region41: #{albert_layer_group.1} parent=11 // pred_check
          %p445 = pneg %p247
        $region42: #{albert_layer_group.1} parent=11 // pred_check_branch
          %447 = sbr.rel (%p445) target = $region44
        $region43: #{albert_layer_group.1} parent=11 // pred_region
          _
        $region44: #{albert_layer_group.1} parent=11 // pred_fallthru
          _
        // Predicated region
        $region45: #{albert_layer_group.1} parent=11 // pred_check
          %p448 = pneg %p268
        $region46: #{albert_layer_group.1} parent=11 // pred_check_branch
          %450 = sbr.rel (%p448) target = $region48
        $region47: #{albert_layer_group.1} parent=11 // pred_region
          _
        $region48: #{albert_layer_group.1} parent=11 // pred_fallthru
          _
        // Predicated region
        $region49: #{albert_layer_group.1} parent=11 // pred_check
          %p451 = pneg %p289
        $region50: #{albert_layer_group.1} parent=11 // pred_check_branch
          %453 = sbr.rel (%p451) target = $region52
        $region51: #{albert_layer_group.1} parent=11 // pred_region
          %455 = vsyncadd [#allocation9], 0
          %s456 = sshll.u32 %s11, 4
          %s457 = int_to_ptr.hbm [resolvable:$true] %s456
          %s458 = sshll.u32 [#allocation8], 4
          %s459 = int_to_ptr.vmem [resolvable:$true] %s458
          %464 = dma.hbm_to_vmem [thread:$0]  %s457, 512, %s459, [#allocation9], 64, 64, 4
        $region52: #{albert_layer_group.1} parent=11 // pred_fallthru
          _
        // Predicated region
        $region53: #{albert_layer_group.1} parent=11 // pred_check
          %p465 = pneg %p310
        $region54: #{albert_layer_group.1} parent=11 // pred_check_branch
          %467 = sbr.rel (%p465) target = $region56
        $region55: #{albert_layer_group.1} parent=11 // pred_region
          %469 = vsyncadd [#allocation9], 0
          %s471 = sshll.u32 %s12, 4
          %s472 = int_to_ptr.hbm [resolvable:$true] %s471
          %s473 = sshll.u32 [#allocation10], 4
          %s474 = int_to_ptr.vmem [resolvable:$true] %s473
          %476 = dma.hbm_to_vmem [thread:$0]  %s472, 32, %s474, [#allocation9]
        $region56: #{albert_layer_group.1} parent=11 // pred_fallthru
          _
        // Predicated region
        $region57: #{albert_layer_group.1} parent=11 // pred_check
          %p477 = pneg %p331
        $region58: #{albert_layer_group.1} parent=11 // pred_check_branch
          %479 = sbr.rel (%p477) target = $region60
        $region59: #{albert_layer_group.1} parent=11 // pred_region
          _
        $region60: #{albert_layer_group.1} parent=11 // pred_fallthru
          _
        // Predicated region
        $region61: #{albert_layer_group.1} parent=11 // pred_check
          %p480 = pneg %p352
        $region62: #{albert_layer_group.1} parent=11 // pred_check_branch
          %482 = sbr.rel (%p480) target = $region64
        $region63: #{albert_layer_group.1} parent=11 // pred_region
          _
        $region64: #{albert_layer_group.1} parent=11 // pred_fallthru
          _
      $region12: #{albert_layer_group.1} parent=5 // pred_fallthru
        _
      %p483 = scmp.lt.s32.totalorder %s27, 2
      // Predicated region
      $region65: #{albert_layer_group.1} parent=5 // pred_check
        %p484 = pneg %p483
      $region66: #{albert_layer_group.1} parent=5 // pred_check_branch
        %486 = sbr.rel (%p484) target = $region68
      $region67: #{albert_layer_group.1} parent=5 // pred_region
        // Predicated region
        $region69: #{albert_layer_group.1} parent=67 // pred_check
          %p487 = pneg %p47
        $region70: #{albert_layer_group.1} parent=67 // pred_check_branch
          %489 = sbr.rel (%p487) target = $region72
        $region71: #{albert_layer_group.1} parent=67 // pred_region
          %p490 = scmp.lt.s32.totalorder %s27, 1
          %s491 = scalar_select %p490, %s27, 1
          %s492 = smul.addr %s491, 8
          %s493 = scalar_lea.vmem %s0, %s492
        $region72: #{albert_layer_group.1} parent=67 // pred_fallthru
          _
        // Predicated region
        $region73: #{albert_layer_group.1} parent=67 // pred_check
          %p494 = pneg %p73
        $region74: #{albert_layer_group.1} parent=67 // pred_check_branch
          %496 = sbr.rel (%p494) target = $region76
        $region75: #{albert_layer_group.1} parent=67 // pred_region
          %p497 = scmp.lt.s32.totalorder %s27, 1
          %s498 = scalar_select %p497, %s27, 1
          %s499 = smul.addr %s498, 8
          %s500 = scalar_lea.vmem %s1, %s499
        $region76: #{albert_layer_group.1} parent=67 // pred_fallthru
          _
      $region68: #{albert_layer_group.1} parent=5 // pred_fallthru
        _
      %p501 = scmp.le.s32.totalorder 1, %s27
      %p502 = scmp.lt.s32.totalorder %s27, 3
      %p503 = pnand %p501, %p502
      %p504 = pneg %p503
      // Predicated region
      $region77: #{albert_layer_group.1} parent=5 // pred_check
        _
      $region78: #{albert_layer_group.1} parent=5 // pred_check_branch
        %506 = sbr.rel (%p503) target = $region80
      $region79: #{albert_layer_group.1} parent=5 // pred_region
        %s507 = ssub.s32 %s27, 1
        // Predicated region
        $region81: #{albert_layer_group.1} parent=79 // pred_check
          %p508 = pneg %p121
        $region82: #{albert_layer_group.1} parent=79 // pred_check_branch
          %510 = sbr.rel (%p508) target = $region84
        $region83: #{albert_layer_group.1} parent=79 // pred_region
          %512 = dma.done [#allocation3], 512
        $region84: #{albert_layer_group.1} parent=79 // pred_fallthru
          _
        // Predicated region
        $region85: #{albert_layer_group.1} parent=79 // pred_check
          %p513 = pneg %p163
        $region86: #{albert_layer_group.1} parent=79 // pred_check_branch
          %515 = sbr.rel (%p513) target = $region88
        $region87: #{albert_layer_group.1} parent=79 // pred_region
          %517 = dma.done [#allocation6], 512
        $region88: #{albert_layer_group.1} parent=79 // pred_fallthru
          _
        // Predicated region
        $region89: #{albert_layer_group.1} parent=79 // pred_check
          %p518 = pneg %p184
        $region90: #{albert_layer_group.1} parent=79 // pred_check_branch
          %520 = sbr.rel (%p518) target = $region92
        $region91: #{albert_layer_group.1} parent=79 // pred_region
          %522 = dma.done [#allocation6], 32
        $region92: #{albert_layer_group.1} parent=79 // pred_fallthru
          _
        // Predicated region
        $region93: #{albert_layer_group.1} parent=79 // pred_check
          %p523 = pneg %p289
        $region94: #{albert_layer_group.1} parent=79 // pred_check_branch
          %525 = sbr.rel (%p523) target = $region96
        $region95: #{albert_layer_group.1} parent=79 // pred_region
          %527 = dma.done [#allocation9], 512
        $region96: #{albert_layer_group.1} parent=79 // pred_fallthru
          _
        // Predicated region
        $region97: #{albert_layer_group.1} parent=79 // pred_check
          %p528 = pneg %p310
        $region98: #{albert_layer_group.1} parent=79 // pred_check_branch
          %530 = sbr.rel (%p528) target = $region100
        $region99: #{albert_layer_group.1} parent=79 // pred_region
          %532 = dma.done [#allocation9], 32
        $region100: #{albert_layer_group.1} parent=79 // pred_fallthru
          _
        %p533 = scmp.lt.s32.totalorder %s32, 1
        %s534 = scalar_select %p533, %s32, 1
        %s535 = smul.addr %s534, 8
        %s536 = scalar_lea.vmem %s0, %s535
        %p537 = pneg %p53
        %p538 = pneg %p50
        %p539 = scmp.lt.s32.totalorder %s32, 1
        %s540 = scalar_select %p539, %s32, 1
        %s541 = smul.addr %s540, 8
        %s542 = scalar_lea.vmem %s1, %s541
        %p543 = pneg %p79
        %p544 = pneg %p76
        %p545 = pneg %p100
        %p546 = pneg %p97
        %p547 = pneg %p121
        %p548 = pneg %p118
        %p549 = pneg %p142
        %p550 = pneg %p139
        %p551 = pneg %p163
        %p552 = pneg %p160
        %p553 = pneg %p184
        %p554 = pneg %p181
        %p555 = pneg %p205
        %p556 = pneg %p202
        %p557 = pneg %p226
        %p558 = pneg %p223
        %p559 = pneg %p247
        %p560 = pneg %p244
        %p561 = pneg %p268
        %p562 = pneg %p265
        %p563 = pneg %p289
        %p564 = pneg %p286
        %p565 = pneg %p310
        %p566 = pneg %p307
        %p567 = pneg %p331
        %p568 = pneg %p328
        %p569 = pneg %p352
        %p570 = pneg %p349
        %p571 = pneg %p378
        %p572 = pneg %p375
        %s573 = sand.u32 %s365, 1
        %s574 = scalar_lea.sflag [#allocation4], %s573
        %s575 = sand.u32 %s365, 1
        %s576 = smul.addr %s575, 8
        %s577 = scalar_lea.vmem [#allocation11], %s576
        %p578 = scmp.lt.s32.totalorder %s32, 1
        %s579 = scalar_select %p578, %s32, 1
        %s580 = smul.addr %s579, 8
        %s581 = scalar_lea.vmem %s0, %s580
        %p582 = scmp.lt.s32.totalorder %s32, 1
        %s583 = scalar_select %p582, %s32, 1
        %s584 = smul.addr %s583, 8
        %s585 = scalar_lea.vmem %s1, %s584
        %v587 = vld [vmem:[%s581] sm:$0xff]
        %v588 = vld [vmem:[%s585] sm:$0xff]
        %v589 = vld [vmem:[%s2] sm:$0xff]
        %v590 = vld [vmem:[%s2 + $0x8] sm:$0xff]
        %v591 = vld [vmem:[%s2 + $0x10] sm:$0xff]
        %v592 = vld [vmem:[%s2 + $0x18] sm:$0xff]
        %v593 = vpack.c.bf16 %v587, %v587
        %v594 = vld [vmem:[#allocation2] sm:$0xf]
        %v595 = vld [vmem:[#allocation2 + $0x4] sm:$0xf]
        %v596 = vld [vmem:[#allocation2 + $0x8] sm:$0xf]
        %v597 = vld [vmem:[#allocation2 + $0xc] sm:$0xf]
        %v598 = vld [vmem:[%s4] sm:$0x1]
        %v599 = vperm.slane %v598, 0
        %v604 = vunpack.c.l.b16 %v594
        %v605 = vunpack.c.l.b16 %v595
        %v606 = vunpack.c.l.b16 %v596
        %v607 = vunpack.c.l.b16 %v597
        %v608 = vpack.c.b16 %v605, %v604
        %v609 = vpack.c.b16 %v607, %v606
        %vm612 = vcmask 261120
        %v614 = vsel %vm612, %v593, 0
        %616 = vmatpush.bf16.msra.mxu0 0
        %617 = vmatpush.bf16.msra.mxu0 0
        %618 = vmatpush.bf16.msra.mxu0 0
        %619 = vmatpush.bf16.msra.mxu0 0
        %620 = vmatpush.bf16.msra.mxu0 0
        %621 = vmatpush.bf16.msra.mxu0 0
        %622 = vmatpush.bf16.msra.mxu0 %v609
        %623 = vmatpush.bf16.msra.mxu0 %v608
        %624 = vmatmul.bf16.gmra.mxu0 %v614
        %v625 = vpop.f32.mrf.mxu0
        %v626 = vadd.f32 %v599, %v625
        %v627 = vpop.f32.mrf.mxu0
        %628 = vdwg.mxu0
        %633 = vrot.lane.b32.xlu0 %v589, 32
        %v634 = vpop.permute.xlu0 %633
        %635 = vrot.lane.b32.xlu0 %v590, 32
        %v636 = vpop.permute.xlu0 %635
        %637 = vrot.lane.b32.xlu0 %v591, 32
        %v638 = vpop.permute.xlu0 %637
        %639 = vrot.lane.b32.xlu0 %v592, 32
        %v640 = vpop.permute.xlu0 %639
        %v645 = vmul.f32 %v626, %v634
        %v646 = vmul.f32 %v626, %v636
        %v647 = vmul.f32 %v626, %v638
        %v648 = vmul.f32 %v626, %v640
        %v649 = vpack.c.bf16 %v646, %v645
        %v650 = vpack.c.bf16 %v648, %v647
        %651 = vrot.lane.b32.xlu0 %v589, 64
        %v652 = vpop.permute.xlu0 %651
        %653 = vrot.lane.b32.xlu0 %v590, 64
        %v654 = vpop.permute.xlu0 %653
        %655 = vrot.lane.b32.xlu0 %v591, 64
        %v656 = vpop.permute.xlu0 %655
        %657 = vrot.lane.b32.xlu0 %v592, 64
        %v658 = vpop.permute.xlu0 %657
        %v663 = vmul.f32 %v626, %v652
        %v664 = vmul.f32 %v626, %v654
        %v665 = vmul.f32 %v626, %v656
        %v666 = vmul.f32 %v626, %v658
        %v667 = vpack.c.bf16 %v664, %v663
        %v668 = vpack.c.bf16 %v666, %v665
        %v669 = vpack.c.bf16 %v626, %v626
        %672 = vrot.lane.b32.xlu0 %v649, 96
        %v673 = vpop.permute.xlu0 %672
        %674 = vrot.lane.b32.xlu0 %v650, 96
        %v675 = vpop.permute.xlu0 %674
        %v677 = vsel %vm612, %v669, 0
        %v680 = vsel %vm612, %v673, 0
        %v683 = vsel %vm612, %v675, 0
        %685 = vmatpush.bf16.xpose.msra.mxu0 0
        %686 = vmatpush.bf16.xpose.msra.mxu0 0
        %687 = vmatpush.bf16.xpose.msra.mxu0 0
        %688 = vmatpush.bf16.xpose.msra.mxu0 0
        %689 = vmatpush.bf16.xpose.msra.mxu0 0
        %690 = vmatpush.bf16.xpose.msra.mxu0 0
        %691 = vmatpush.bf16.xpose.msra.mxu0 %v683
        %692 = vmatpush.bf16.xpose.msra.mxu0 %v680
        %693 = vmatmul.bf16.gmra.mxu0 %v677
        %v694 = vpop.f32.mrf.mxu0
        %v695 = vadd.f32 %v588, %v694
        %v696 = vpop.f32.mrf.mxu0
        %697 = vdwg.mxu0
        %699 = vrot.lane.b32.xlu0 %v695, 120
        %v700 = vpop.permute.xlu0 %699
        %702 = vrot.lane.b32.xlu0 %v695, 112
        %v703 = vpop.permute.xlu0 %702
        %705 = vrot.lane.b32.xlu0 %v695, 104
        %v706 = vpop.permute.xlu0 %705
        %v708 = vrot.slane %v703, 4
        %vm709 = vcmask 1047556
        %v710 = vsel %vm709, %v708, %v695
        %v711 = vrot.slane %v695, 4
        %v712 = vsel %vm709, %v703, %v711
        %v714 = vunpack.c.l.s4 1983009808
        %v715 = vunpack.c.0.s8 %v714
        %v716 = vperm.slane %v710, %v715
        %v718 = vunpack.c.l.s4 1983009808
        %v719 = vunpack.c.0.s8 %v718
        %v720 = vperm.slane %v712, %v719
        %v721 = vrot.slane %v706, 4
        %v722 = vsel %vm709, %v721, %v700
        %v723 = vrot.slane %v700, 4
        %v724 = vsel %vm709, %v706, %v723
        %v726 = vunpack.c.l.s4 1983009808
        %v727 = vunpack.c.0.s8 %v726
        %v728 = vperm.slane %v722, %v727
        %v730 = vunpack.c.l.s4 1983009808
        %v731 = vunpack.c.0.s8 %v730
        %v732 = vperm.slane %v724, %v731
        %v733 = vrot.slane %v728, 4
        %v734 = vsel %vm709, %v733, %v716
        %v735 = vrot.slane %v716, 4
        %v736 = vsel %vm709, %v728, %v735
        %v738 = vunpack.c.l.s4 1934713408
        %v739 = vunpack.c.0.s8 %v738
        %v740 = vperm.slane %v734, %v739
        %v742 = vunpack.c.l.s4 1934713408
        %v743 = vunpack.c.0.s8 %v742
        %v744 = vperm.slane %v736, %v743
        %v745 = vrot.slane %v732, 4
        %v746 = vsel %vm709, %v745, %v720
        %v747 = vrot.slane %v720, 4
        %v748 = vsel %vm709, %v732, %v747
        %v750 = vunpack.c.l.s4 1934713408
        %v751 = vunpack.c.0.s8 %v750
        %v752 = vperm.slane %v746, %v751
        %v754 = vunpack.c.l.s4 1934713408
        %v755 = vunpack.c.0.s8 %v754
        %v756 = vperm.slane %v748, %v755
        %v757 = vrot.slane %v740, 4
        %v758 = vsel %vm709, 0.0, %v757
        %v759 = vrot.slane %v744, 4
        %v760 = vsel %vm709, 0.0, %v759
        %v761 = vrot.slane %v752, 4
        %v762 = vsel %vm709, 0.0, %v761
        %v763 = vrot.slane %v756, 4
        %v764 = vsel %vm709, 0.0, %v763
        %vm765 = vcmask 60416
        %v766 = vsel %vm765, %v740, -inf
        %767 = vmax.xlane.f32.xlu0 %v766
        %v768 = vpop.xlane.xlu0 %767
        %v769 = vsel %vm765, %v758, -inf
        %770 = vmax.xlane.f32.xlu0 %v769
        %v771 = vpop.xlane.xlu0 %770
        %v772 = vsel %vm765, %v744, -inf
        %773 = vmax.xlane.f32.xlu0 %v772
        %v774 = vpop.xlane.xlu0 %773
        %v775 = vsel %vm765, %v760, -inf
        %776 = vmax.xlane.f32.xlu0 %v775
        %v777 = vpop.xlane.xlu0 %776
        %v778 = vsel %vm765, %v752, -inf
        %779 = vmax.xlane.f32.xlu0 %v778
        %v780 = vpop.xlane.xlu0 %779
        %v781 = vsel %vm765, %v762, -inf
        %782 = vmax.xlane.f32.xlu0 %v781
        %v783 = vpop.xlane.xlu0 %782
        %v784 = vsel %vm765, %v756, -inf
        %785 = vmax.xlane.f32.xlu0 %v784
        %v786 = vpop.xlane.xlu0 %785
        %v787 = vsel %vm765, %v764, -inf
        %788 = vmax.xlane.f32.xlu0 %v787
        %v789 = vpop.xlane.xlu0 %788
        %v790 = vsub.f32 %v740, %v768
        %v791 = vsub.f32 %v758, %v771
        %v792 = vsub.f32 %v744, %v774
        %v793 = vsub.f32 %v760, %v777
        %v794 = vsub.f32 %v752, %v780
        %v795 = vsub.f32 %v762, %v783
        %v796 = vsub.f32 %v756, %v786
        %v797 = vsub.f32 %v764, %v789
        %v798 = vmul.f32 %v790, 1.442695
        %v799 = vpow.pop %v798
        %v800 = vmul.f32 %v791, 1.442695
        %v801 = vpow.pop %v800
        %v802 = vmul.f32 %v792, 1.442695
        %v803 = vpow.pop %v802
        %v804 = vmul.f32 %v793, 1.442695
        %v805 = vpow.pop %v804
        %v806 = vmul.f32 %v794, 1.442695
        %v807 = vpow.pop %v806
        %v808 = vmul.f32 %v795, 1.442695
        %v809 = vpow.pop %v808
        %v810 = vmul.f32 %v796, 1.442695
        %v811 = vpow.pop %v810
        %v812 = vmul.f32 %v797, 1.442695
        %v813 = vpow.pop %v812
        %v814 = vsel %vm765, %v799, 0.0
        %815 = vadd.xlane.f32.xlu0 %v814
        %v816 = vpop.xlane.xlu0 %815
        %v817 = vsel %vm765, %v801, 0.0
        %818 = vadd.xlane.f32.xlu0 %v817
        %v819 = vpop.xlane.xlu0 %818
        %v820 = vsel %vm765, %v803, 0.0
        %821 = vadd.xlane.f32.xlu0 %v820
        %v822 = vpop.xlane.xlu0 %821
        %v823 = vsel %vm765, %v805, 0.0
        %824 = vadd.xlane.f32.xlu0 %v823
        %v825 = vpop.xlane.xlu0 %824
        %v826 = vsel %vm765, %v807, 0.0
        %827 = vadd.xlane.f32.xlu0 %v826
        %v828 = vpop.xlane.xlu0 %827
        %v829 = vsel %vm765, %v809, 0.0
        %830 = vadd.xlane.f32.xlu0 %v829
        %v831 = vpop.xlane.xlu0 %830
        %v832 = vsel %vm765, %v811, 0.0
        %833 = vadd.xlane.f32.xlu0 %v832
        %v834 = vpop.xlane.xlu0 %833
        %v835 = vsel %vm765, %v813, 0.0
        %836 = vadd.xlane.f32.xlu0 %v835
        %v837 = vpop.xlane.xlu0 %836
        %v838 = vrcp.pop %v816
        %v839 = vrcp.pop %v819
        %v840 = vrcp.pop %v822
        %v841 = vrcp.pop %v825
        %v842 = vrcp.pop %v828
        %v843 = vrcp.pop %v831
        %v844 = vrcp.pop %v834
        %v845 = vrcp.pop %v837
        %v846 = vmul.f32 %v799, %v838
        %v847 = vmul.f32 %v801, %v839
        %v848 = vmul.f32 %v803, %v840
        %v849 = vmul.f32 %v805, %v841
        %v850 = vmul.f32 %v807, %v842
        %v851 = vmul.f32 %v809, %v843
        %v852 = vmul.f32 %v811, %v844
        %v853 = vmul.f32 %v813, %v845
        %v854 = vrot.slane %v848, 4
        %v855 = vsel %vm709, %v854, %v846
        %v857 = vunpack.c.l.s4 1983009808
        %v858 = vunpack.c.0.s8 %v857
        %v859 = vperm.slane %v855, %v858
        %v860 = vrot.slane %v849, 4
        %v861 = vsel %vm709, %v860, %v847
        %v863 = vunpack.c.l.s4 1983009808
        %v864 = vunpack.c.0.s8 %v863
        %v865 = vperm.slane %v861, %v864
        %v866 = vrot.slane %v852, 4
        %v867 = vsel %vm709, %v866, %v850
        %v869 = vunpack.c.l.s4 1983009808
        %v870 = vunpack.c.0.s8 %v869
        %v871 = vperm.slane %v867, %v870
        %v872 = vrot.slane %v853, 4
        %v873 = vsel %vm709, %v872, %v851
        %v875 = vunpack.c.l.s4 1983009808
        %v876 = vunpack.c.0.s8 %v875
        %v877 = vperm.slane %v873, %v876
        %v878 = vrot.slane %v865, 4
        %v879 = vsel %vm709, %v878, %v859
        %v880 = vrot.slane %v859, 4
        %v881 = vsel %vm709, %v865, %v880
        %v883 = vunpack.c.l.s4 1934713408
        %v884 = vunpack.c.0.s8 %v883
        %v885 = vperm.slane %v879, %v884
        %v887 = vunpack.c.l.s4 1934713408
        %v888 = vunpack.c.0.s8 %v887
        %v889 = vperm.slane %v881, %v888
        %v890 = vrot.slane %v877, 4
        %v891 = vsel %vm709, %v890, %v871
        %v892 = vrot.slane %v871, 4
        %v893 = vsel %vm709, %v877, %v892
        %v895 = vunpack.c.l.s4 1934713408
        %v896 = vunpack.c.0.s8 %v895
        %v897 = vperm.slane %v891, %v896
        %v899 = vunpack.c.l.s4 1934713408
        %v900 = vunpack.c.0.s8 %v899
        %v901 = vperm.slane %v893, %v900
        %v902 = vrot.slane %v897, 4
        %v903 = vsel %vm709, %v902, %v885
        %v904 = vrot.slane %v885, 4
        %v905 = vsel %vm709, %v897, %v904
        %v906 = vrot.slane %v901, 4
        %v907 = vsel %vm709, %v906, %v889
        %v908 = vrot.slane %v889, 4
        %v909 = vsel %vm709, %v901, %v908
        %911 = vrot.lane.b32.xlu0 %v905, 8
        %v912 = vpop.permute.xlu0 %911
        %915 = vrot.lane.b32.xlu0 %v907, 16
        %v916 = vpop.permute.xlu0 %915
        %919 = vrot.lane.b32.xlu0 %v909, 24
        %v920 = vpop.permute.xlu0 %919
        %vm922 = vcmask 64512
        %v923 = vsel %vm922, %v903, %v912
        %vm924 = vcmask 130048
        %v925 = vsel %vm924, %v923, %v916
        %vm926 = vcmask 195584
        %v927 = vsel %vm926, %v925, %v920
        %v928 = vpack.c.bf16 %v927, %v927
        %931 = vrot.lane.b32.xlu0 %v667, 64
        %v932 = vpop.permute.xlu0 %931
        %933 = vrot.lane.b32.xlu0 %v668, 64
        %v934 = vpop.permute.xlu0 %933
        %v938 = vsel %vm612, %v928, 0
        %940 = vmatpush.bf16.msra.mxu0 0
        %941 = vmatpush.bf16.msra.mxu0 0
        %942 = vmatpush.bf16.msra.mxu0 0
        %943 = vmatpush.bf16.msra.mxu0 0
        %944 = vmatpush.bf16.msra.mxu0 0
        %945 = vmatpush.bf16.msra.mxu0 0
        %946 = vmatpush.bf16.msra.mxu0 %v934
        %947 = vmatpush.bf16.msra.mxu0 %v932
        %948 = vmatmul.bf16.gmra.mxu0 %v938
        %v949 = vpop.f32.mrf.mxu0
        %v950 = vadd.f32 0.0, %v949
        %v951 = vpop.f32.mrf.mxu0
        %952 = vdwg.mxu0
        %v953 = vpack.c.bf16 %v950, %v950
        %v954 = vld [vmem:[#allocation5] sm:$0xf]
        %v955 = vld [vmem:[#allocation5 + $0x4] sm:$0xf]
        %v956 = vld [vmem:[#allocation5 + $0x8] sm:$0xf]
        %v957 = vld [vmem:[#allocation5 + $0xc] sm:$0xf]
        %v958 = vld [vmem:[#allocation7] sm:$0x1]
        %v959 = vperm.slane %v958, 0
        %v964 = vunpack.c.l.b16 %v954
        %v965 = vunpack.c.l.b16 %v955
        %v966 = vunpack.c.l.b16 %v956
        %v967 = vunpack.c.l.b16 %v957
        %v968 = vpack.c.b16 %v965, %v964
        %v969 = vpack.c.b16 %v967, %v966
        %v973 = vsel %vm612, %v953, 0
        %975 = vmatpush.bf16.msra.mxu0 0
        %976 = vmatpush.bf16.msra.mxu0 0
        %977 = vmatpush.bf16.msra.mxu0 0
        %978 = vmatpush.bf16.msra.mxu0 0
        %979 = vmatpush.bf16.msra.mxu0 0
        %980 = vmatpush.bf16.msra.mxu0 0
        %981 = vmatpush.bf16.msra.mxu0 %v969
        %982 = vmatpush.bf16.msra.mxu0 %v968
        %983 = vmatmul.bf16.gmra.mxu0 %v973
        %v984 = vpop.f32.mrf.mxu0
        %v985 = vadd.f32 %v959, %v984
        %v986 = vpop.f32.mrf.mxu0
        %987 = vdwg.mxu0
        %v988 = vadd.f32 %v587, %v985
        %v989 = vld [vmem:[%s7] sm:$0x1]
        %v990 = vld [vmem:[%s8] sm:$0x1]
        %v991 = vsel %vm612, %v988, 0.0
        %992 = vadd.xlane.f32.xlu0 %v991
        %v993 = vpop.xlane.xlu0 %992
        %v994 = vrcp.pop 32.0
        %v995 = vmul.f32 32.0, %v994
        %v996 = vsub.f32 1.0, %v995
        %v997 = vmul.f32 %v994, %v996
        %v998 = vadd.f32 %v994, %v997
        %vm999 = vweird.f32 %v994
        %v1000 = vsel %vm999, %v994, %v998
        %v1001 = vmul.f32 %v993, %v1000
        %v1002 = vsub.f32 %v988, %v1001
        %v1003 = vmul.f32 %v1002, %v1002
        %v1004 = vsel %vm612, %v1003, 0.0
        %1005 = vadd.xlane.f32.xlu0 %v1004
        %v1006 = vpop.xlane.xlu0 %1005
        %v1007 = vmul.f32 %v1006, %v1000
        %v1008 = vadd.f32 %v1007, 1e-05
        %v1009 = vrsqrt.pop %v1008
        %v1010 = vmul.f32 %v1009, %v1008
        %v1011 = vmul.f32 %v1010, %v1009
        %v1012 = vmul.f32 0.5, %v1011
        %v1013 = vsub.f32 1.5, %v1012
        %v1014 = vmul.f32 %v1009, %v1013
        %vm1015 = vweird.f32 %v1008
        %vm1016 = vweird.f32 %v1009
        %vm1017 = vmor %vm1015, %vm1016
        %v1018 = vsel %vm1017, %v1009, %v1014
        %v1019 = vmul.f32 %v1002, %v1018
        %v1020 = vperm.slane %v989, 0
        %v1021 = vmul.f32 %v1019, %v1020
        %v1022 = vperm.slane %v990, 0
        %v1023 = vadd.f32 %v1021, %v1022
        %v1024 = vpack.c.bf16 %v1023, %v1023
        %v1025 = vld [vmem:[#allocation8] sm:$0xf]
        %v1026 = vld [vmem:[#allocation8 + $0x4] sm:$0xf]
        %v1027 = vld [vmem:[#allocation8 + $0x8] sm:$0xf]
        %v1028 = vld [vmem:[#allocation8 + $0xc] sm:$0xf]
        %v1029 = vld [vmem:[#allocation10] sm:$0x1]
        %v1030 = vperm.slane %v1029, 0
        %v1035 = vunpack.c.l.b16 %v1025
        %v1036 = vunpack.c.l.b16 %v1026
        %v1037 = vunpack.c.l.b16 %v1027
        %v1038 = vunpack.c.l.b16 %v1028
        %v1039 = vpack.c.b16 %v1036, %v1035
        %v1040 = vpack.c.b16 %v1038, %v1037
        %v1044 = vsel %vm612, %v1024, 0
        %1046 = vmatpush.bf16.msra.mxu0 0
        %1047 = vmatpush.bf16.msra.mxu0 0
        %1048 = vmatpush.bf16.msra.mxu0 0
        %1049 = vmatpush.bf16.msra.mxu0 0
        %1050 = vmatpush.bf16.msra.mxu0 0
        %1051 = vmatpush.bf16.msra.mxu0 0
        %1052 = vmatpush.bf16.msra.mxu0 %v1040
        %1053 = vmatpush.bf16.msra.mxu0 %v1039
        %1054 = vmatmul.bf16.gmra.mxu0 %v1044
        %v1055 = vpop.f32.mrf.mxu0
        %v1056 = vadd.f32 %v1030, %v1055
        %v1057 = vpop.f32.mrf.mxu0
        %1058 = vdwg.mxu0
        %v1059 = vmul.f32 %v1056, 0.5
        %v1060 = vmul.f32 %v1056, 0.044715
        %v1061 = vmul.f32 %v1060, %v1056
        %v1062 = vmul.f32 %v1061, %v1056
        %v1063 = vadd.f32 %v1056, %v1062
        %v1064 = vmul.f32 %v1063, 0.7978846
        %v1065 = vtanh.pop %v1064
        %v1066 = vadd.f32 %v1065, 1.0
        %v1067 = vmul.f32 %v1059, %v1066
        %v1068 = vpack.c.bf16 %v1067, %v1067
        %v1069 = vld [vmem:[%s13] sm:$0xf]
        %v1070 = vld [vmem:[%s13 + $0x4] sm:$0xf]
        %v1071 = vld [vmem:[%s13 + $0x8] sm:$0xf]
        %v1072 = vld [vmem:[%s13 + $0xc] sm:$0xf]
        %v1073 = vld [vmem:[%s13 + $0x10] sm:$0xf]
        %v1074 = vld [vmem:[%s13 + $0x14] sm:$0xf]
        %v1075 = vld [vmem:[%s13 + $0x18] sm:$0xf]
        %v1076 = vld [vmem:[%s13 + $0x1c] sm:$0xf]
        %v1077 = vld [vmem:[%s14] sm:$0x1]
        %v1078 = vperm.slane %v1077, 0
        %v1087 = vunpack.c.l.b16 %v1069
        %v1088 = vunpack.c.l.b16 %v1070
        %v1089 = vunpack.c.l.b16 %v1071
        %v1090 = vunpack.c.l.b16 %v1072
        %v1091 = vunpack.c.l.b16 %v1073
        %v1092 = vunpack.c.l.b16 %v1074
        %v1093 = vunpack.c.l.b16 %v1075
        %v1094 = vunpack.c.l.b16 %v1076
        %v1095 = vpack.c.b16 %v1088, %v1087
        %v1096 = vpack.c.b16 %v1090, %v1089
        %v1097 = vpack.c.b16 %v1092, %v1091
        %v1098 = vpack.c.b16 %v1094, %v1093
        %vm1103 = vcmask 523264
        %v1105 = vsel %vm1103, %v1068, 0
        %1107 = vmatpush.bf16.msra.mxu0 0
        %1108 = vmatpush.bf16.msra.mxu0 0
        %1109 = vmatpush.bf16.msra.mxu0 0
        %1110 = vmatpush.bf16.msra.mxu0 0
        %1111 = vmatpush.bf16.msra.mxu0 %v1098
        %1112 = vmatpush.bf16.msra.mxu0 %v1097
        %1113 = vmatpush.bf16.msra.mxu0 %v1096
        %1114 = vmatpush.bf16.msra.mxu0 %v1095
        %1115 = vmatmul.bf16.gmra.mxu0 %v1105
        %v1116 = vpop.f32.mrf.mxu0
        %v1117 = vadd.f32 %v1078, %v1116
        %v1118 = vpop.f32.mrf.mxu0
        %1119 = vdwg.mxu0
        %v1120 = vadd.f32 %v1023, %v1117
        %v1121 = vld [vmem:[%s9] sm:$0x1]
        %v1122 = vld [vmem:[%s10] sm:$0x1]
        %v1123 = vsel %vm612, %v1120, 0.0
        %1124 = vadd.xlane.f32.xlu0 %v1123
        %v1125 = vpop.xlane.xlu0 %1124
        %v1126 = vmul.f32 %v1125, %v1000
        %v1127 = vsub.f32 %v1120, %v1126
        %v1128 = vmul.f32 %v1127, %v1127
        %v1129 = vsel %vm612, %v1128, 0.0
        %1130 = vadd.xlane.f32.xlu0 %v1129
        %v1131 = vpop.xlane.xlu0 %1130
        %v1132 = vmul.f32 %v1131, %v1000
        %v1133 = vadd.f32 %v1132, 1e-05
        %v1134 = vrsqrt.pop %v1133
        %v1135 = vmul.f32 %v1134, %v1133
        %v1136 = vmul.f32 %v1135, %v1134
        %v1137 = vmul.f32 0.5, %v1136
        %v1138 = vsub.f32 1.5, %v1137
        %v1139 = vmul.f32 %v1134, %v1138
        %vm1140 = vweird.f32 %v1133
        %vm1141 = vweird.f32 %v1134
        %vm1142 = vmor %vm1140, %vm1141
        %v1143 = vsel %vm1142, %v1134, %v1139
        %v1144 = vmul.f32 %v1127, %v1143
        %v1145 = vperm.slane %v1121, 0
        %v1146 = vmul.f32 %v1144, %v1145
        %v1147 = vperm.slane %v1122, 0
        %v1148 = vadd.f32 %v1146, %v1147
        %v1149 = vpack.c.bf16 %v1148, %v1148
        %s1150 = scalar_lea.vmem [#allocation2], 16
        %v1151 = vld [vmem:[%s1150] sm:$0xf]
        %v1152 = vld [vmem:[%s1150 + $0x4] sm:$0xf]
        %v1153 = vld [vmem:[%s1150 + $0x8] sm:$0xf]
        %v1154 = vld [vmem:[%s1150 + $0xc] sm:$0xf]
        %v1155 = vld [vmem:[%s4 + $0x1] sm:$0x1]
        %v1156 = vperm.slane %v1155, 0
        %v1161 = vunpack.c.l.b16 %v1151
        %v1162 = vunpack.c.l.b16 %v1152
        %v1163 = vunpack.c.l.b16 %v1153
        %v1164 = vunpack.c.l.b16 %v1154
        %v1165 = vpack.c.b16 %v1162, %v1161
        %v1166 = vpack.c.b16 %v1164, %v1163
        %v1170 = vsel %vm612, %v1149, 0
        %1172 = vmatpush.bf16.msra.mxu0 0
        %1173 = vmatpush.bf16.msra.mxu0 0
        %1174 = vmatpush.bf16.msra.mxu0 0
        %1175 = vmatpush.bf16.msra.mxu0 0
        %1176 = vmatpush.bf16.msra.mxu0 0
        %1177 = vmatpush.bf16.msra.mxu0 0
        %1178 = vmatpush.bf16.msra.mxu0 %v1166
        %1179 = vmatpush.bf16.msra.mxu0 %v1165
        %1180 = vmatmul.bf16.gmra.mxu0 %v1170
        %v1181 = vpop.f32.mrf.mxu0
        %v1182 = vadd.f32 %v1156, %v1181
        %v1183 = vpop.f32.mrf.mxu0
        %1184 = vdwg.mxu0
        %v1185 = vmul.f32 %v1182, %v634
        %v1186 = vmul.f32 %v1182, %v636
        %v1187 = vmul.f32 %v1182, %v638
        %v1188 = vmul.f32 %v1182, %v640
        %v1189 = vpack.c.bf16 %v1186, %v1185
        %v1190 = vpack.c.bf16 %v1188, %v1187
        %v1191 = vmul.f32 %v1182, %v652
        %v1192 = vmul.f32 %v1182, %v654
        %v1193 = vmul.f32 %v1182, %v656
        %v1194 = vmul.f32 %v1182, %v658
        %v1195 = vpack.c.bf16 %v1192, %v1191
        %v1196 = vpack.c.bf16 %v1194, %v1193
        %v1197 = vpack.c.bf16 %v1182, %v1182
        %1200 = vrot.lane.b32.xlu0 %v1189, 96
        %v1201 = vpop.permute.xlu0 %1200
        %1202 = vrot.lane.b32.xlu0 %v1190, 96
        %v1203 = vpop.permute.xlu0 %1202
        %v1205 = vsel %vm612, %v1197, 0
        %v1208 = vsel %vm612, %v1201, 0
        %v1211 = vsel %vm612, %v1203, 0
        %1213 = vmatpush.bf16.xpose.msra.mxu0 0
        %1214 = vmatpush.bf16.xpose.msra.mxu0 0
        %1215 = vmatpush.bf16.xpose.msra.mxu0 0
        %1216 = vmatpush.bf16.xpose.msra.mxu0 0
        %1217 = vmatpush.bf16.xpose.msra.mxu0 0
        %1218 = vmatpush.bf16.xpose.msra.mxu0 0
        %1219 = vmatpush.bf16.xpose.msra.mxu0 %v1211
        %1220 = vmatpush.bf16.xpose.msra.mxu0 %v1208
        %1221 = vmatmul.bf16.gmra.mxu0 %v1205
        %v1222 = vpop.f32.mrf.mxu0
        %v1223 = vadd.f32 %v588, %v1222
        %v1224 = vpop.f32.mrf.mxu0
        %1225 = vdwg.mxu0
        %1227 = vrot.lane.b32.xlu0 %v1223, 120
        %v1228 = vpop.permute.xlu0 %1227
        %1230 = vrot.lane.b32.xlu0 %v1223, 112
        %v1231 = vpop.permute.xlu0 %1230
        %1233 = vrot.lane.b32.xlu0 %v1223, 104
        %v1234 = vpop.permute.xlu0 %1233
        %v1236 = vrot.slane %v1231, 4
        %v1237 = vsel %vm709, %v1236, %v1223
        %v1238 = vrot.slane %v1223, 4
        %v1239 = vsel %vm709, %v1231, %v1238
        %v1241 = vunpack.c.l.s4 1983009808
        %v1242 = vunpack.c.0.s8 %v1241
        %v1243 = vperm.slane %v1237, %v1242
        %v1245 = vunpack.c.l.s4 1983009808
        %v1246 = vunpack.c.0.s8 %v1245
        %v1247 = vperm.slane %v1239, %v1246
        %v1248 = vrot.slane %v1234, 4
        %v1249 = vsel %vm709, %v1248, %v1228
        %v1250 = vrot.slane %v1228, 4
        %v1251 = vsel %vm709, %v1234, %v1250
        %v1253 = vunpack.c.l.s4 1983009808
        %v1254 = vunpack.c.0.s8 %v1253
        %v1255 = vperm.slane %v1249, %v1254
        %v1257 = vunpack.c.l.s4 1983009808
        %v1258 = vunpack.c.0.s8 %v1257
        %v1259 = vperm.slane %v1251, %v1258
        %v1260 = vrot.slane %v1255, 4
        %v1261 = vsel %vm709, %v1260, %v1243
        %v1262 = vrot.slane %v1243, 4
        %v1263 = vsel %vm709, %v1255, %v1262
        %v1265 = vunpack.c.l.s4 1934713408
        %v1266 = vunpack.c.0.s8 %v1265
        %v1267 = vperm.slane %v1261, %v1266
        %v1269 = vunpack.c.l.s4 1934713408
        %v1270 = vunpack.c.0.s8 %v1269
        %v1271 = vperm.slane %v1263, %v1270
        %v1272 = vrot.slane %v1259, 4
        %v1273 = vsel %vm709, %v1272, %v1247
        %v1274 = vrot.slane %v1247, 4
        %v1275 = vsel %vm709, %v1259, %v1274
        %v1277 = vunpack.c.l.s4 1934713408
        %v1278 = vunpack.c.0.s8 %v1277
        %v1279 = vperm.slane %v1273, %v1278
        %v1281 = vunpack.c.l.s4 1934713408
        %v1282 = vunpack.c.0.s8 %v1281
        %v1283 = vperm.slane %v1275, %v1282
        %v1284 = vrot.slane %v1267, 4
        %v1285 = vsel %vm709, 0.0, %v1284
        %v1286 = vrot.slane %v1271, 4
        %v1287 = vsel %vm709, 0.0, %v1286
        %v1288 = vrot.slane %v1279, 4
        %v1289 = vsel %vm709, 0.0, %v1288
        %v1290 = vrot.slane %v1283, 4
        %v1291 = vsel %vm709, 0.0, %v1290
        %v1292 = vsel %vm765, %v1267, -inf
        %1293 = vmax.xlane.f32.xlu0 %v1292
        %v1294 = vpop.xlane.xlu0 %1293
        %v1295 = vsel %vm765, %v1285, -inf
        %1296 = vmax.xlane.f32.xlu0 %v1295
        %v1297 = vpop.xlane.xlu0 %1296
        %v1298 = vsel %vm765, %v1271, -inf
        %1299 = vmax.xlane.f32.xlu0 %v1298
        %v1300 = vpop.xlane.xlu0 %1299
        %v1301 = vsel %vm765, %v1287, -inf
        %1302 = vmax.xlane.f32.xlu0 %v1301
        %v1303 = vpop.xlane.xlu0 %1302
        %v1304 = vsel %vm765, %v1279, -inf
        %1305 = vmax.xlane.f32.xlu0 %v1304
        %v1306 = vpop.xlane.xlu0 %1305
        %v1307 = vsel %vm765, %v1289, -inf
        %1308 = vmax.xlane.f32.xlu0 %v1307
        %v1309 = vpop.xlane.xlu0 %1308
        %v1310 = vsel %vm765, %v1283, -inf
        %1311 = vmax.xlane.f32.xlu0 %v1310
        %v1312 = vpop.xlane.xlu0 %1311
        %v1313 = vsel %vm765, %v1291, -inf
        %1314 = vmax.xlane.f32.xlu0 %v1313
        %v1315 = vpop.xlane.xlu0 %1314
        %v1316 = vsub.f32 %v1267, %v1294
        %v1317 = vsub.f32 %v1285, %v1297
        %v1318 = vsub.f32 %v1271, %v1300
        %v1319 = vsub.f32 %v1287, %v1303
        %v1320 = vsub.f32 %v1279, %v1306
        %v1321 = vsub.f32 %v1289, %v1309
        %v1322 = vsub.f32 %v1283, %v1312
        %v1323 = vsub.f32 %v1291, %v1315
        %v1324 = vmul.f32 %v1316, 1.442695
        %v1325 = vpow.pop %v1324
        %v1326 = vmul.f32 %v1317, 1.442695
        %v1327 = vpow.pop %v1326
        %v1328 = vmul.f32 %v1318, 1.442695
        %v1329 = vpow.pop %v1328
        %v1330 = vmul.f32 %v1319, 1.442695
        %v1331 = vpow.pop %v1330
        %v1332 = vmul.f32 %v1320, 1.442695
        %v1333 = vpow.pop %v1332
        %v1334 = vmul.f32 %v1321, 1.442695
        %v1335 = vpow.pop %v1334
        %v1336 = vmul.f32 %v1322, 1.442695
        %v1337 = vpow.pop %v1336
        %v1338 = vmul.f32 %v1323, 1.442695
        %v1339 = vpow.pop %v1338
        %v1340 = vsel %vm765, %v1325, 0.0
        %1341 = vadd.xlane.f32.xlu0 %v1340
        %v1342 = vpop.xlane.xlu0 %1341
        %v1343 = vsel %vm765, %v1327, 0.0
        %1344 = vadd.xlane.f32.xlu0 %v1343
        %v1345 = vpop.xlane.xlu0 %1344
        %v1346 = vsel %vm765, %v1329, 0.0
        %1347 = vadd.xlane.f32.xlu0 %v1346
        %v1348 = vpop.xlane.xlu0 %1347
        %v1349 = vsel %vm765, %v1331, 0.0
        %1350 = vadd.xlane.f32.xlu0 %v1349
        %v1351 = vpop.xlane.xlu0 %1350
        %v1352 = vsel %vm765, %v1333, 0.0
        %1353 = vadd.xlane.f32.xlu0 %v1352
        %v1354 = vpop.xlane.xlu0 %1353
        %v1355 = vsel %vm765, %v1335, 0.0
        %1356 = vadd.xlane.f32.xlu0 %v1355
        %v1357 = vpop.xlane.xlu0 %1356
        %v1358 = vsel %vm765, %v1337, 0.0
        %1359 = vadd.xlane.f32.xlu0 %v1358
        %v1360 = vpop.xlane.xlu0 %1359
        %v1361 = vsel %vm765, %v1339, 0.0
        %1362 = vadd.xlane.f32.xlu0 %v1361
        %v1363 = vpop.xlane.xlu0 %1362
        %v1364 = vrcp.pop %v1342
        %v1365 = vrcp.pop %v1345
        %v1366 = vrcp.pop %v1348
        %v1367 = vrcp.pop %v1351
        %v1368 = vrcp.pop %v1354
        %v1369 = vrcp.pop %v1357
        %v1370 = vrcp.pop %v1360
        %v1371 = vrcp.pop %v1363
        %v1372 = vmul.f32 %v1325, %v1364
        %v1373 = vmul.f32 %v1327, %v1365
        %v1374 = vmul.f32 %v1329, %v1366
        %v1375 = vmul.f32 %v1331, %v1367
        %v1376 = vmul.f32 %v1333, %v1368
        %v1377 = vmul.f32 %v1335, %v1369
        %v1378 = vmul.f32 %v1337, %v1370
        %v1379 = vmul.f32 %v1339, %v1371
        %v1380 = vrot.slane %v1374, 4
        %v1381 = vsel %vm709, %v1380, %v1372
        %v1383 = vunpack.c.l.s4 1983009808
        %v1384 = vunpack.c.0.s8 %v1383
        %v1385 = vperm.slane %v1381, %v1384
        %v1386 = vrot.slane %v1375, 4
        %v1387 = vsel %vm709, %v1386, %v1373
        %v1389 = vunpack.c.l.s4 1983009808
        %v1390 = vunpack.c.0.s8 %v1389
        %v1391 = vperm.slane %v1387, %v1390
        %v1392 = vrot.slane %v1378, 4
        %v1393 = vsel %vm709, %v1392, %v1376
        %v1395 = vunpack.c.l.s4 1983009808
        %v1396 = vunpack.c.0.s8 %v1395
        %v1397 = vperm.slane %v1393, %v1396
        %v1398 = vrot.slane %v1379, 4
        %v1399 = vsel %vm709, %v1398, %v1377
        %v1401 = vunpack.c.l.s4 1983009808
        %v1402 = vunpack.c.0.s8 %v1401
        %v1403 = vperm.slane %v1399, %v1402
        %v1404 = vrot.slane %v1391, 4
        %v1405 = vsel %vm709, %v1404, %v1385
        %v1406 = vrot.slane %v1385, 4
        %v1407 = vsel %vm709, %v1391, %v1406
        %v1409 = vunpack.c.l.s4 1934713408
        %v1410 = vunpack.c.0.s8 %v1409
        %v1411 = vperm.slane %v1405, %v1410
        %v1413 = vunpack.c.l.s4 1934713408
        %v1414 = vunpack.c.0.s8 %v1413
        %v1415 = vperm.slane %v1407, %v1414
        %v1416 = vrot.slane %v1403, 4
        %v1417 = vsel %vm709, %v1416, %v1397
        %v1418 = vrot.slane %v1397, 4
        %v1419 = vsel %vm709, %v1403, %v1418
        %v1421 = vunpack.c.l.s4 1934713408
        %v1422 = vunpack.c.0.s8 %v1421
        %v1423 = vperm.slane %v1417, %v1422
        %v1425 = vunpack.c.l.s4 1934713408
        %v1426 = vunpack.c.0.s8 %v1425
        %v1427 = vperm.slane %v1419, %v1426
        %v1428 = vrot.slane %v1423, 4
        %v1429 = vsel %vm709, %v1428, %v1411
        %v1430 = vrot.slane %v1411, 4
        %v1431 = vsel %vm709, %v1423, %v1430
        %v1432 = vrot.slane %v1427, 4
        %v1433 = vsel %vm709, %v1432, %v1415
        %v1434 = vrot.slane %v1415, 4
        %v1435 = vsel %vm709, %v1427, %v1434
        %1437 = vrot.lane.b32.xlu0 %v1431, 8
        %v1438 = vpop.permute.xlu0 %1437
        %1441 = vrot.lane.b32.xlu0 %v1433, 16
        %v1442 = vpop.permute.xlu0 %1441
        %1445 = vrot.lane.b32.xlu0 %v1435, 24
        %v1446 = vpop.permute.xlu0 %1445
        %v1448 = vsel %vm922, %v1429, %v1438
        %v1449 = vsel %vm924, %v1448, %v1442
        %v1450 = vsel %vm926, %v1449, %v1446
        %v1451 = vpack.c.bf16 %v1450, %v1450
        %1454 = vrot.lane.b32.xlu0 %v1195, 64
        %v1455 = vpop.permute.xlu0 %1454
        %1456 = vrot.lane.b32.xlu0 %v1196, 64
        %v1457 = vpop.permute.xlu0 %1456
        %v1461 = vsel %vm612, %v1451, 0
        %1463 = vmatpush.bf16.msra.mxu0 0
        %1464 = vmatpush.bf16.msra.mxu0 0
        %1465 = vmatpush.bf16.msra.mxu0 0
        %1466 = vmatpush.bf16.msra.mxu0 0
        %1467 = vmatpush.bf16.msra.mxu0 0
        %1468 = vmatpush.bf16.msra.mxu0 0
        %1469 = vmatpush.bf16.msra.mxu0 %v1457
        %1470 = vmatpush.bf16.msra.mxu0 %v1455
        %1471 = vmatmul.bf16.gmra.mxu0 %v1461
        %v1472 = vpop.f32.mrf.mxu0
        %v1473 = vadd.f32 0.0, %v1472
        %v1474 = vpop.f32.mrf.mxu0
        %1475 = vdwg.mxu0
        %v1476 = vpack.c.bf16 %v1473, %v1473
        %s1477 = scalar_lea.vmem [#allocation5], 16
        %v1478 = vld [vmem:[%s1477] sm:$0xf]
        %v1479 = vld [vmem:[%s1477 + $0x4] sm:$0xf]
        %v1480 = vld [vmem:[%s1477 + $0x8] sm:$0xf]
        %v1481 = vld [vmem:[%s1477 + $0xc] sm:$0xf]
        %v1482 = vld [vmem:[#allocation7 + $0x1] sm:$0x1]
        %v1483 = vperm.slane %v1482, 0
        %v1488 = vunpack.c.l.b16 %v1478
        %v1489 = vunpack.c.l.b16 %v1479
        %v1490 = vunpack.c.l.b16 %v1480
        %v1491 = vunpack.c.l.b16 %v1481
        %v1492 = vpack.c.b16 %v1489, %v1488
        %v1493 = vpack.c.b16 %v1491, %v1490
        %v1497 = vsel %vm612, %v1476, 0
        %1499 = vmatpush.bf16.msra.mxu0 0
        %1500 = vmatpush.bf16.msra.mxu0 0
        %1501 = vmatpush.bf16.msra.mxu0 0
        %1502 = vmatpush.bf16.msra.mxu0 0
        %1503 = vmatpush.bf16.msra.mxu0 0
        %1504 = vmatpush.bf16.msra.mxu0 0
        %1505 = vmatpush.bf16.msra.mxu0 %v1493
        %1506 = vmatpush.bf16.msra.mxu0 %v1492
        %1507 = vmatmul.bf16.gmra.mxu0 %v1497
        %v1508 = vpop.f32.mrf.mxu0
        %v1509 = vadd.f32 %v1483, %v1508
        %v1510 = vpop.f32.mrf.mxu0
        %1511 = vdwg.mxu0
        %v1512 = vadd.f32 %v1148, %v1509
        %v1513 = vld [vmem:[%s7 + $0x1] sm:$0x1]
        %v1514 = vld [vmem:[%s8 + $0x1] sm:$0x1]
        %v1515 = vsel %vm612, %v1512, 0.0
        %1516 = vadd.xlane.f32.xlu0 %v1515
        %v1517 = vpop.xlane.xlu0 %1516
        %v1518 = vmul.f32 %v1517, %v1000
        %v1519 = vsub.f32 %v1512, %v1518
        %v1520 = vmul.f32 %v1519, %v1519
        %v1521 = vsel %vm612, %v1520, 0.0
        %1522 = vadd.xlane.f32.xlu0 %v1521
        %v1523 = vpop.xlane.xlu0 %1522
        %v1524 = vmul.f32 %v1523, %v1000
        %v1525 = vadd.f32 %v1524, 1e-05
        %v1526 = vrsqrt.pop %v1525
        %v1527 = vmul.f32 %v1526, %v1525
        %v1528 = vmul.f32 %v1527, %v1526
        %v1529 = vmul.f32 0.5, %v1528
        %v1530 = vsub.f32 1.5, %v1529
        %v1531 = vmul.f32 %v1526, %v1530
        %vm1532 = vweird.f32 %v1525
        %vm1533 = vweird.f32 %v1526
        %vm1534 = vmor %vm1532, %vm1533
        %v1535 = vsel %vm1534, %v1526, %v1531
        %v1536 = vmul.f32 %v1519, %v1535
        %v1537 = vperm.slane %v1513, 0
        %v1538 = vmul.f32 %v1536, %v1537
        %v1539 = vperm.slane %v1514, 0
        %v1540 = vadd.f32 %v1538, %v1539
        %v1541 = vpack.c.bf16 %v1540, %v1540
        %s1542 = scalar_lea.vmem [#allocation8], 16
        %v1543 = vld [vmem:[%s1542] sm:$0xf]
        %v1544 = vld [vmem:[%s1542 + $0x4] sm:$0xf]
        %v1545 = vld [vmem:[%s1542 + $0x8] sm:$0xf]
        %v1546 = vld [vmem:[%s1542 + $0xc] sm:$0xf]
        %v1547 = vld [vmem:[#allocation10 + $0x1] sm:$0x1]
        %v1548 = vperm.slane %v1547, 0
        %v1553 = vunpack.c.l.b16 %v1543
        %v1554 = vunpack.c.l.b16 %v1544
        %v1555 = vunpack.c.l.b16 %v1545
        %v1556 = vunpack.c.l.b16 %v1546
        %v1557 = vpack.c.b16 %v1554, %v1553
        %v1558 = vpack.c.b16 %v1556, %v1555
        %v1562 = vsel %vm612, %v1541, 0
        %1564 = vmatpush.bf16.msra.mxu0 0
        %1565 = vmatpush.bf16.msra.mxu0 0
        %1566 = vmatpush.bf16.msra.mxu0 0
        %1567 = vmatpush.bf16.msra.mxu0 0
        %1568 = vmatpush.bf16.msra.mxu0 0
        %1569 = vmatpush.bf16.msra.mxu0 0
        %1570 = vmatpush.bf16.msra.mxu0 %v1558
        %1571 = vmatpush.bf16.msra.mxu0 %v1557
        %1572 = vmatmul.bf16.gmra.mxu0 %v1562
        %v1573 = vpop.f32.mrf.mxu0
        %v1574 = vadd.f32 %v1548, %v1573
        %v1575 = vpop.f32.mrf.mxu0
        %1576 = vdwg.mxu0
        %v1577 = vmul.f32 %v1574, 0.5
        %v1578 = vmul.f32 %v1574, 0.044715
        %v1579 = vmul.f32 %v1578, %v1574
        %v1580 = vmul.f32 %v1579, %v1574
        %v1581 = vadd.f32 %v1574, %v1580
        %v1582 = vmul.f32 %v1581, 0.7978846
        %v1583 = vtanh.pop %v1582
        %v1584 = vadd.f32 %v1583, 1.0
        %v1585 = vmul.f32 %v1577, %v1584
        %v1586 = vpack.c.bf16 %v1585, %v1585
        %s1587 = scalar_lea.vmem %s13, 32
        %v1588 = vld [vmem:[%s1587] sm:$0xf]
        %v1589 = vld [vmem:[%s1587 + $0x4] sm:$0xf]
        %v1590 = vld [vmem:[%s1587 + $0x8] sm:$0xf]
        %v1591 = vld [vmem:[%s1587 + $0xc] sm:$0xf]
        %v1592 = vld [vmem:[%s1587 + $0x10] sm:$0xf]
        %v1593 = vld [vmem:[%s1587 + $0x14] sm:$0xf]
        %v1594 = vld [vmem:[%s1587 + $0x18] sm:$0xf]
        %v1595 = vld [vmem:[%s1587 + $0x1c] sm:$0xf]
        %v1596 = vld [vmem:[%s14 + $0x1] sm:$0x1]
        %v1597 = vperm.slane %v1596, 0
        %v1606 = vunpack.c.l.b16 %v1588
        %v1607 = vunpack.c.l.b16 %v1589
        %v1608 = vunpack.c.l.b16 %v1590
        %v1609 = vunpack.c.l.b16 %v1591
        %v1610 = vunpack.c.l.b16 %v1592
        %v1611 = vunpack.c.l.b16 %v1593
        %v1612 = vunpack.c.l.b16 %v1594
        %v1613 = vunpack.c.l.b16 %v1595
        %v1614 = vpack.c.b16 %v1607, %v1606
        %v1615 = vpack.c.b16 %v1609, %v1608
        %v1616 = vpack.c.b16 %v1611, %v1610
        %v1617 = vpack.c.b16 %v1613, %v1612
        %v1623 = vsel %vm1103, %v1586, 0
        %1625 = vmatpush.bf16.msra.mxu0 0
        %1626 = vmatpush.bf16.msra.mxu0 0
        %1627 = vmatpush.bf16.msra.mxu0 0
        %1628 = vmatpush.bf16.msra.mxu0 0
        %1629 = vmatpush.bf16.msra.mxu0 %v1617
        %1630 = vmatpush.bf16.msra.mxu0 %v1616
        %1631 = vmatpush.bf16.msra.mxu0 %v1615
        %1632 = vmatpush.bf16.msra.mxu0 %v1614
        %1633 = vmatmul.bf16.gmra.mxu0 %v1623
        %v1634 = vpop.f32.mrf.mxu0
        %v1635 = vadd.f32 %v1597, %v1634
        %v1636 = vpop.f32.mrf.mxu0
        %1637 = vdwg.mxu0
        %v1638 = vadd.f32 %v1540, %v1635
        %v1639 = vld [vmem:[%s9 + $0x1] sm:$0x1]
        %v1640 = vld [vmem:[%s10 + $0x1] sm:$0x1]
        %v1641 = vsel %vm612, %v1638, 0.0
        %1642 = vadd.xlane.f32.xlu0 %v1641
        %v1643 = vpop.xlane.xlu0 %1642
        %v1644 = vmul.f32 %v1643, %v1000
        %v1645 = vsub.f32 %v1638, %v1644
        %v1646 = vmul.f32 %v1645, %v1645
        %v1647 = vsel %vm612, %v1646, 0.0
        %1648 = vadd.xlane.f32.xlu0 %v1647
        %v1649 = vpop.xlane.xlu0 %1648
        %v1650 = vmul.f32 %v1649, %v1000
        %v1651 = vadd.f32 %v1650, 1e-05
        %v1652 = vrsqrt.pop %v1651
        %v1653 = vmul.f32 %v1652, %v1651
        %v1654 = vmul.f32 %v1653, %v1652
        %v1655 = vmul.f32 0.5, %v1654
        %v1656 = vsub.f32 1.5, %v1655
        %v1657 = vmul.f32 %v1652, %v1656
        %vm1658 = vweird.f32 %v1651
        %vm1659 = vweird.f32 %v1652
        %vm1660 = vmor %vm1658, %vm1659
        %v1661 = vsel %vm1660, %v1652, %v1657
        %v1662 = vmul.f32 %v1645, %v1661
        %v1663 = vperm.slane %v1639, 0
        %v1664 = vmul.f32 %v1662, %v1663
        %v1665 = vperm.slane %v1640, 0
        %v1666 = vadd.f32 %v1664, %v1665
        %1667 = vst.msk [vmem:[%s577] sm:$0xff] %vm612, %v1666
        %s1668 = sand.u32 %s365, 1
        %s1669 = scalar_lea.sflag [#allocation4], %s1668
        %s1670 = sand.u32 %s365, 1
        %s1671 = smul.addr %s1670, 8
        %s1672 = scalar_lea.vmem [#allocation11], %s1671
        // Predicated region
        $region101: #{albert_layer_group.1} parent=79 // pred_check
          %p1673 = pneg %p375
        $region102: #{albert_layer_group.1} parent=79 // pred_check_branch
          %1675 = sbr.rel (%p1673) target = $region104
        $region103: #{albert_layer_group.1} parent=79 // pred_region
          %1677 = vsyncadd %s1669, 0
          %s1678 = smul.addr %s32, 8
          %s1679 = scalar_lea.hbm %s15, %s1678
          %s1681 = sshll.u32 %s1672, 4
          %s1682 = int_to_ptr.vmem [resolvable:$true] %s1681
          %s1683 = sshll.u32 %s1679, 4
          %s1684 = int_to_ptr.hbm [resolvable:$true] %s1683
          %1686 = dma.vmem_to_hbm [thread:$0]  %s1682, 128, %s1684, %s1669
        $region104: #{albert_layer_group.1} parent=79 // pred_fallthru
          _
      $region80: #{albert_layer_group.1} parent=5 // pred_fallthru
        _
      %p1687 = scmp.le.s32.totalorder 2, %s27
      // Predicated region
      $region105: #{albert_layer_group.1} parent=5 // pred_check
        %p1688 = pneg %p1687
      $region106: #{albert_layer_group.1} parent=5 // pred_check_branch
        %1690 = sbr.rel (%p1688) target = $region108
      $region107: #{albert_layer_group.1} parent=5 // pred_region
        %s1691 = ssub.s32 %s27, 2
        // Predicated region
        $region109: #{albert_layer_group.1} parent=107 // pred_check
          %p1692 = pneg %p381
        $region110: #{albert_layer_group.1} parent=107 // pred_check_branch
          %1694 = sbr.rel (%p1692) target = $region112
        $region111: #{albert_layer_group.1} parent=107 // pred_region
          %s1695 = sand.u32 %s366, 1
          %s1696 = scalar_lea.sflag [#allocation4], %s1695
          %s1697 = sand.u32 %s366, 1
          %s1698 = smul.addr %s1697, 8
          %s1699 = scalar_lea.vmem [#allocation11], %s1698
          %1701 = dma.done %s1696, 128
        $region112: #{albert_layer_group.1} parent=107 // pred_fallthru
          _
      $region108: #{albert_layer_group.1} parent=5 // pred_fallthru
        _
    $region6: #{albert_layer_group.1} parent=1 // loop_footer
      %s31 = sadd.s32 1, %s27
    $region7: #{albert_layer_group.1} parent=1 // loop_footer_branch
      %26 = sbr.rel target = $region3
    $region8: #{albert_layer_group.1} parent=1 // loop_exit
      _
    %1702 = vsyncpa [#allocation3], 1
    %s1703 = scalar_lea.sflag [#allocation3], 1
    %1704 = vsyncpa %s1703, 1
    %1705 = vsyncpa [#allocation6], 1
    %1706 = vsyncpa [#allocation9], 1
    %1707 = vsyncpa [#allocation4], 1
    %s1708 = scalar_lea.sflag [#allocation4], 1
    %1709 = vsyncpa %s1708, 1

</llo_original>
